<compile_context>
chip_gen: v6e
topology: v6e:2x2x1
jax: 0.10.0
libtpu: 0.0.40
codegen_flags: <defaults>
</compile_context>

<pallas_src>
import functools

import jax
import jax.numpy as jnp
from jax import lax
from jax.experimental import pallas as pl
from jax.experimental.pallas import tpu as pltpu


def _round_up(x, m):
    return (x + m - 1) // m * m


def _pack_gates_lane_aligned(w, hidden, hidden_pad):
    """PyTorch (4*hidden, in_dim) gate-stacked weight -> (in_dim, 4*hidden_pad).

    Gate order [i, f, g, o]; each gate occupies its own lane-aligned
    `hidden_pad`-wide block (padding lanes are zero).
    """
    in_dim = w.shape[1]
    w4 = w.reshape(4, hidden, in_dim)
    w4p = jnp.zeros((4, hidden_pad, in_dim), w.dtype).at[:, :hidden, :].set(w4)
    return jnp.transpose(w4p, (2, 0, 1)).reshape(in_dim, 4 * hidden_pad)


def _pack_gate_bias(b, hidden, hidden_pad):
    b4 = b.reshape(4, hidden)
    b4p = jnp.zeros((4, hidden_pad), b.dtype).at[:, :hidden].set(b4)
    return b4p.reshape(4 * hidden_pad)


def _sigmoid_tanh(x):
    # sigmoid(x) == 0.5*tanh(0.5*x) + 0.5 : one EUP op instead of exp+recip.
    return 0.5 * jnp.tanh(0.5 * x) + 0.5


def lstm_fc_kernel(emb_ref, wih_ref, whh_ref, bias_ref, wfc_ref, bfc_ref,
                   logits_ref, wx_scr, h_scr, c_scr, *, pad_front, unroll):
    """One (batch-block, time-chunk) grid step: input proj + recurrence + FC.

    emb_ref:  (Tc, Bb, Ep)   bf16  streamed embedding chunk (auto double-buffered)
    wih_ref:  (Ep, 4*Hp)     bf16  resident
    whh_ref:  (Hp, 4*Hp)     bf16  resident
    bias_ref: (1, 4*Hp)      f32   resident (b_ih + b_hh, per-gate lane-aligned)
    wfc_ref:  (Hp, Cp)       bf16  resident
    bfc_ref:  (1, Cp)        f32   resident
    logits_ref: (Bb, Cp)     f32   written only on the last time chunk
    wx_scr:   (Tc, Bb, 4*Hp) f32   per-chunk input projection
    h_scr, c_scr: (Bb, Hp)   f32   carried across the time axis
    """
    Tc, Bb, Ep = emb_ref.shape
    Hp = whh_ref.shape[0]
    t_blk = pl.program_id(1)

    @pl.when(t_blk == 0)
    def _():
        h_scr[...] = jnp.zeros_like(h_scr)
        c_scr[...] = jnp.zeros_like(c_scr)

    # ---- Input projection for the whole chunk: one big dependence-free matmul.
    # (Tc, Bb, Ep) -> (Tc*Bb, Ep): collapses leading dims only (Bb multiple of 8),
    # so the reshape is layout-free.
    emb2d = emb_ref[...].reshape(Tc * Bb, Ep)
    wx = jnp.dot(emb2d, wih_ref[...],
                 preferred_element_type=jnp.float32) + bias_ref[...]
    wx_scr[...] = wx.reshape(Tc, Bb, 4 * Hp)

    # Front-padded (invalid) timesteps must see exactly-zero pre-activation
    # gates so they act as identity steps while h = c = 0 (tanh(0) = 0 keeps c
    # at 0 even though the padded-lane gates evaluate to 0.5).
    if pad_front > 0:
        @pl.when(t_blk == 0)
        def _():
            wx_scr[0:pad_front] = jnp.zeros((pad_front, Bb, 4 * Hp),
                                            jnp.float32)

    # ---- Serial recurrence: h / c carried as loop values (vregs), scratch is
    # only touched once per chunk.
    def step(t, carry):
        h, c = carry
        gates = wx_scr[t] + jnp.dot(h.astype(jnp.bfloat16), whh_ref[...],
                                    preferred_element_type=jnp.float32)
        # Lane-aligned per-gate slices (each gate is a 128-multiple block).
        i = _sigmoid_tanh(gates[:, 0 * Hp:1 * Hp])
        f = _sigmoid_tanh(gates[:, 1 * Hp:2 * Hp])
        g = jnp.tanh(gates[:, 2 * Hp:3 * Hp])
        o = _sigmoid_tanh(gates[:, 3 * Hp:4 * Hp])
        c_new = f * c + i * g
        h_new = o * jnp.tanh(c_new)
        return h_new, c_new

    h_fin, c_fin = lax.fori_loop(0, Tc, step, (h_scr[...], c_scr[...]),
                                 unroll=unroll)
    h_scr[...] = h_fin
    c_scr[...] = c_fin

    @pl.when(t_blk == pl.num_programs(1) - 1)
    def _():
        logits_ref[...] = (
            jnp.dot(h_fin.astype(jnp.bfloat16), wfc_ref[...],
                    preferred_element_type=jnp.float32) + bfc_ref[...])


def init_params(key, vocab_size, embedding_dim=128, hidden_dim=256,
                num_classes=2):
    """Parameters in PyTorch layout (weight_ih/hh stacked [i,f,g,o])."""
    ks = jax.random.split(key, 7)
    k = 1.0 / float(hidden_dim) ** 0.5
    return {
        "embedding": jax.random.normal(ks[0], (vocab_size, embedding_dim),
                                       jnp.float32),
        "w_ih": jax.random.uniform(ks[1], (4 * hidden_dim, embedding_dim),
                                   jnp.float32, -k, k),
        "w_hh": jax.random.uniform(ks[2], (4 * hidden_dim, hidden_dim),
                                   jnp.float32, -k, k),
        "b_ih": jax.random.uniform(ks[3], (4 * hidden_dim,), jnp.float32, -k, k),
        "b_hh": jax.random.uniform(ks[4], (4 * hidden_dim,), jnp.float32, -k, k),
        "w_fc": jax.random.uniform(ks[5], (num_classes, hidden_dim),
                                   jnp.float32, -k, k),
        "b_fc": jax.random.uniform(ks[6], (num_classes,), jnp.float32, -k, k),
    }


def sentiment_forward(x_ids, params, *, block_b=128, time_chunk=16, unroll=8):
    """x_ids: (B, T) int32 token ids -> logits (B, num_classes) float32.

    On v7x, choose block_b <= B/2 (rounded to a multiple of 8) so that
    nb = B_pad / Bb >= 2 and both TensorCores get a batch block.
    """
    B, T = x_ids.shape
    E = params["embedding"].shape[1]
    H = params["w_hh"].shape[1]
    C = params["w_fc"].shape[0]

    # Hardware-friendly padded sizes.
    Ep = _round_up(E, 128)                       # lane-aligned embedding width
    Hp = _round_up(H, 128)                       # per-gate lane-aligned block
    Cp = _round_up(C, 128)                       # lane-dense logits
    Bb = min(_round_up(B, 8), _round_up(block_b, 8))
    B_pad = _round_up(B, Bb)
    Tc = min(T, time_chunk)
    T_pad = _round_up(T, Tc)
    pad_front = T_pad - T                        # static

    # ---- glue: embedding gather; stream bf16 embeddings into the kernel ----
    emb = params["embedding"][x_ids].astype(jnp.bfloat16)        # (B, T, E)
    emb = jnp.transpose(emb, (1, 0, 2))                          # (T, B, E)
    # Front-pad time (identity steps, masked to zero gates in-kernel), pad
    # batch + embedding lanes with zeros.
    emb = jnp.pad(emb, ((pad_front, 0), (0, B_pad - B), (0, Ep - E)))

    # Weights, gate-packed + padded + bf16 for the MXU (padded rows/lanes zero).
    w_ih_p = jnp.zeros((Ep, 4 * Hp), jnp.float32).at[:E, :].set(
        _pack_gates_lane_aligned(params["w_ih"], H, Hp)).astype(jnp.bfloat16)
    w_hh_p = jnp.zeros((Hp, 4 * Hp), jnp.float32).at[:H, :].set(
        _pack_gates_lane_aligned(params["w_hh"], H, Hp)).astype(jnp.bfloat16)
    bias_p = _pack_gate_bias(params["b_ih"] + params["b_hh"], H, Hp
                             ).reshape(1, 4 * Hp).astype(jnp.float32)
    w_fc_p = jnp.zeros((Hp, Cp), jnp.float32).at[:H, :C].set(
        params["w_fc"].T).astype(jnp.bfloat16)
    b_fc_p = jnp.zeros((1, Cp), jnp.float32).at[0, :C].set(params["b_fc"])

    nb = B_pad // Bb
    nt = T_pad // Tc

    kernel = functools.partial(lstm_fc_kernel, pad_front=pad_front,
                               unroll=max(1, min(unroll, Tc)))

    logits_pad = pl.pallas_call(
        kernel,
        out_shape=jax.ShapeDtypeStruct((B_pad, Cp), jnp.float32),
        grid_spec=pltpu.PrefetchScalarGridSpec(
            num_scalar_prefetch=0,
            grid=(nb, nt),
            in_specs=[
                # bf16 embedding chunks stream along the time axis.
                pl.BlockSpec((Tc, Bb, Ep), lambda b, t: (t, b, 0)),
                # Weights/bias: same block every grid step -> stay resident.
                pl.BlockSpec((Ep, 4 * Hp), lambda b, t: (0, 0)),
                pl.BlockSpec((Hp, 4 * Hp), lambda b, t: (0, 0)),
                pl.BlockSpec((1, 4 * Hp), lambda b, t: (0, 0)),
                pl.BlockSpec((Hp, Cp), lambda b, t: (0, 0)),
                pl.BlockSpec((1, Cp), lambda b, t: (0, 0)),
            ],
            out_specs=pl.BlockSpec((Bb, Cp), lambda b, t: (b, 0)),
            scratch_shapes=[
                pltpu.VMEM((Tc, Bb, 4 * Hp), jnp.float32),   # wx chunk
                pltpu.VMEM((Bb, Hp), jnp.float32),           # h
                pltpu.VMEM((Bb, Hp), jnp.float32),           # c
            ],
        ),
        compiler_params=pltpu.CompilerParams(
            dimension_semantics=("parallel", "arbitrary"),
            vmem_limit_bytes=32 * 1024 * 1024,
        ),
    )(emb, w_ih_p, w_hh_p, bias_p, w_fc_p, b_fc_p)

    return logits_pad[:B, :C]


def predict_proba(x_ids, params):
    # TODO(synk): softmax stays in plain JAX (cheap epilogue, not worth a kernel).
    logits = sentiment_forward(x_ids, params)
    return jax.nn.softmax(logits, axis=1)


def reference_forward(x_ids, params):
    """Pure-JAX reference mirroring the kernel arithmetic (bf16 matmul inputs,
    f32 accumulation) for a numerical sanity check."""
    emb = params["embedding"][x_ids]                       # (B, T, E)
    H = params["w_hh"].shape[1]
    w_ih = params["w_ih"].astype(jnp.bfloat16)             # (4H, E)
    w_hh = params["w_hh"].astype(jnp.bfloat16)             # (4H, H)
    b = (params["b_ih"] + params["b_hh"]).astype(jnp.float32)
    B, T, _ = emb.shape
    h = jnp.zeros((B, H), jnp.float32)
    c = jnp.zeros((B, H), jnp.float32)
    for t in range(T):
        x_t = emb[:, t, :].astype(jnp.bfloat16)
        gates = (jnp.dot(x_t, w_ih.T, preferred_element_type=jnp.float32)
                 + jnp.dot(h.astype(jnp.bfloat16), w_hh.T,
                           preferred_element_type=jnp.float32) + b)
        i = jax.nn.sigmoid(gates[:, 0:H])
        f = jax.nn.sigmoid(gates[:, H:2 * H])
        g = jnp.tanh(gates[:, 2 * H:3 * H])
        o = jax.nn.sigmoid(gates[:, 3 * H:4 * H])
        c = f * c + i * g
        h = o * jnp.tanh(c)
    return (jnp.dot(h.astype(jnp.bfloat16),
                    params["w_fc"].T.astype(jnp.bfloat16),
                    preferred_element_type=jnp.float32) + params["b_fc"])


if __name__ == "__main__":
    vocab_size = 50
    embedding_dim = 32
    hidden_dim = 32
    num_classes = 2
    batch = 2
    seq = 8

    key = jax.random.PRNGKey(0)
    pkey, xkey = jax.random.split(key)
    params = init_params(pkey, vocab_size, embedding_dim, hidden_dim,
                         num_classes)
    x_ids = jax.random.randint(xkey, (batch, seq), 0, vocab_size,
                               dtype=jnp.int32)

    logits = jax.jit(sentiment_forward)(x_ids, params)
    jax.block_until_ready(logits)
    probs = predict_proba(x_ids, params)
    jax.block_until_ready(probs)

    ref = reference_forward(x_ids, params)
    assert logits.shape == (batch, num_classes)
    assert probs.shape == (batch, num_classes)
    assert bool(jnp.allclose(logits, ref, atol=5e-3, rtol=5e-3)), (logits, ref)
    print("KERNEL_OK")
</pallas_src>

<mosaic_0001>
module attributes {stable_mosaic.version = 11 : i64} {
  func.func @lstm_fc_kernel(%arg0: i32, %arg1: i32, %arg2: memref<8x8x128xbf16, #tpu.memory_space<vmem>>, %arg3: memref<128x512xbf16, #tpu.memory_space<vmem>>, %arg4: memref<128x512xbf16, #tpu.memory_space<vmem>>, %arg5: memref<1x512xf32, #tpu.memory_space<vmem>>, %arg6: memref<128x128xbf16, #tpu.memory_space<vmem>>, %arg7: memref<1x128xf32, #tpu.memory_space<vmem>>, %arg8: memref<8x128xf32, #tpu.memory_space<vmem>>, %arg9: memref<8x8x512xf32, #tpu.memory_space<vmem>>, %arg10: memref<8x128xf32, #tpu.memory_space<vmem>>, %arg11: memref<8x128xf32, #tpu.memory_space<vmem>>) attributes {dimension_semantics = [#tpu.dimension_semantics<parallel>, #tpu.dimension_semantics<arbitrary>], iteration_bounds = array<i64: 1, 1>, scalar_prefetch = 0 : i64, scratch_operands = 3 : i64, tpu.core_type = #tpu.core_type<tc>, window_params = [{transform_indices = @transform_0, window_bounds = array<i64: 8, 8, 128>}, {pipeline_mode = #tpu.pipeline_mode<synchronous>, transform_indices = @transform_1, window_bounds = array<i64: 128, 512>}, {pipeline_mode = #tpu.pipeline_mode<synchronous>, transform_indices = @transform_2, window_bounds = array<i64: 128, 512>}, {pipeline_mode = #tpu.pipeline_mode<synchronous>, transform_indices = @transform_3, window_bounds = array<i64: 1, 512>}, {pipeline_mode = #tpu.pipeline_mode<synchronous>, transform_indices = @transform_4, window_bounds = array<i64: 128, 128>}, {pipeline_mode = #tpu.pipeline_mode<synchronous>, transform_indices = @transform_5, window_bounds = array<i64: 1, 128>}, {transform_indices = @transform_6, window_bounds = array<i64: 8, 128>}]} {
    %c0_i32 = arith.constant 0 : i32
    %0 = arith.cmpi eq, %arg1, %c0_i32 : i32
    %1 = arith.extui %0 : i1 to i32
    %c0_i32_0 = arith.constant 0 : i32
    %2 = arith.cmpi ne, %1, %c0_i32_0 : i32
    scf.if %2 {
      %cst_133 = arith.constant 0.000000e+00 : f32
      %323 = vector.broadcast %cst_133 : f32 to vector<8x128xf32>
      %c0_134 = arith.constant 0 : index
      %c0_135 = arith.constant 0 : index
      %324 = vector.load %arg10[%c0_134, %c0_135] : memref<8x128xf32, #tpu.memory_space<vmem>>, vector<8x128xf32>
      tpu.vector_store %arg10[%c0_134, %c0_135], %323 {strides = array<i32>} : memref<8x128xf32, #tpu.memory_space<vmem>>, vector<8x128xf32>,
      %cst_136 = arith.constant 0.000000e+00 : f32
      %325 = vector.broadcast %cst_136 : f32 to vector<8x128xf32>
      %c0_137 = arith.constant 0 : index
      %c0_138 = arith.constant 0 : index
      %326 = vector.load %arg11[%c0_137, %c0_138] : memref<8x128xf32, #tpu.memory_space<vmem>>, vector<8x128xf32>
      tpu.vector_store %arg11[%c0_137, %c0_138], %325 {strides = array<i32>} : memref<8x128xf32, #tpu.memory_space<vmem>>, vector<8x128xf32>,
    } else {
    }
    %c0 = arith.constant 0 : index
    %c0_1 = arith.constant 0 : index
    %c0_2 = arith.constant 0 : index
    %3 = vector.load %arg2[%c0, %c0_1, %c0_2] : memref<8x8x128xbf16, #tpu.memory_space<vmem>>, vector<8x8x128xbf16>
    %4 = vector.shape_cast %3 : vector<8x8x128xbf16> to vector<64x128xbf16>
    %c0_3 = arith.constant 0 : index
    %c0_4 = arith.constant 0 : index
    %5 = vector.load %arg3[%c0_3, %c0_4] : memref<128x512xbf16, #tpu.memory_space<vmem>>, vector<128x512xbf16>
    %cst = arith.constant dense<0.000000e+00> : vector<64x512xf32>
    %6 = tpu.matmul %4, %5, %cst {dimension_numbers = #tpu.dot_dimension_numbers<[1], [0], [0], [1], [0, 0, 1, 1], [], []>} : vector<64x128xbf16>, vector<128x512xbf16>, vector<64x512xf32> -> vector<64x512xf32>
    %c0_5 = arith.constant 0 : index
    %c0_6 = arith.constant 0 : index
    %7 = vector.load %arg5[%c0_5, %c0_6] : memref<1x512xf32, #tpu.memory_space<vmem>>, vector<1x512xf32>
    %8 = vector.broadcast %7 : vector<1x512xf32> to vector<64x512xf32>
    %9 = arith.addf %6, %8 : vector<64x512xf32>
    %10 = vector.shape_cast %9 : vector<64x512xf32> to vector<8x8x512xf32>
    %c0_7 = arith.constant 0 : index
    %c0_8 = arith.constant 0 : index
    %c0_9 = arith.constant 0 : index
    %11 = vector.load %arg9[%c0_7, %c0_8, %c0_9] : memref<8x8x512xf32, #tpu.memory_space<vmem>>, vector<8x8x512xf32>
    tpu.vector_store %arg9[%c0_7, %c0_8, %c0_9], %10 {strides = array<i32>} : memref<8x8x512xf32, #tpu.memory_space<vmem>>, vector<8x8x512xf32>,
    %c0_10 = arith.constant 0 : index
    %c0_11 = arith.constant 0 : index
    %12 = vector.load %arg10[%c0_10, %c0_11] : memref<8x128xf32, #tpu.memory_space<vmem>>, vector<8x128xf32>
    %c0_12 = arith.constant 0 : index
    %c0_13 = arith.constant 0 : index
    %13 = vector.load %arg11[%c0_12, %c0_13] : memref<8x128xf32, #tpu.memory_space<vmem>>, vector<8x128xf32>
    %c0_i32_14 = arith.constant 0 : i32
    %14 = arith.index_cast %c0_i32_14 : i32 to index
    %c0_15 = arith.constant 0 : index
    %c0_16 = arith.constant 0 : index
    %15 = vector.load %arg9[%14, %c0_15, %c0_16] : memref<8x8x512xf32, #tpu.memory_space<vmem>>, vector<1x8x512xf32>
    %16 = vector.shape_cast %15 : vector<1x8x512xf32> to vector<8x512xf32>
    %17 = arith.truncf %12 : vector<8x128xf32> to vector<8x128xbf16>
    %c0_17 = arith.constant 0 : index
    %c0_18 = arith.constant 0 : index
    %18 = vector.load %arg4[%c0_17, %c0_18] : memref<128x512xbf16, #tpu.memory_space<vmem>>, vector<128x512xbf16>
    %cst_19 = arith.constant dense<0.000000e+00> : vector<8x512xf32>
    %19 = tpu.matmul %17, %18, %cst_19 {dimension_numbers = #tpu.dot_dimension_numbers<[1], [0], [0], [1], [0, 0, 1, 1], [], []>} : vector<8x128xbf16>, vector<128x512xbf16>, vector<8x512xf32> -> vector<8x512xf32>
    %20 = arith.addf %16, %19 : vector<8x512xf32>
    %21 = vector.extract_strided_slice %20 {offsets = [0, 0], sizes = [8, 128], strides = [1, 1]} : vector<8x512xf32> to vector<8x128xf32>
    %cst_20 = arith.constant 5.000000e-01 : f32
    %22 = vector.broadcast %cst_20 : f32 to vector<8x128xf32>
    %23 = arith.mulf %22, %21 : vector<8x128xf32>
    %24 = math.tanh %23 : vector<8x128xf32>
    %cst_21 = arith.constant 5.000000e-01 : f32
    %25 = vector.broadcast %cst_21 : f32 to vector<8x128xf32>
    %26 = arith.mulf %25, %24 : vector<8x128xf32>
    %cst_22 = arith.constant 5.000000e-01 : f32
    %27 = vector.broadcast %cst_22 : f32 to vector<8x128xf32>
    %28 = arith.addf %26, %27 : vector<8x128xf32>
    %29 = vector.extract_strided_slice %20 {offsets = [0, 128], sizes = [8, 128], strides = [1, 1]} : vector<8x512xf32> to vector<8x128xf32>
    %cst_23 = arith.constant 5.000000e-01 : f32
    %30 = vector.broadcast %cst_23 : f32 to vector<8x128xf32>
    %31 = arith.mulf %30, %29 : vector<8x128xf32>
    %32 = math.tanh %31 : vector<8x128xf32>
    %cst_24 = arith.constant 5.000000e-01 : f32
    %33 = vector.broadcast %cst_24 : f32 to vector<8x128xf32>
    %34 = arith.mulf %33, %32 : vector<8x128xf32>
    %cst_25 = arith.constant 5.000000e-01 : f32
    %35 = vector.broadcast %cst_25 : f32 to vector<8x128xf32>
    %36 = arith.addf %34, %35 : vector<8x128xf32>
    %37 = vector.extract_strided_slice %20 {offsets = [0, 256], sizes = [8, 128], strides = [1, 1]} : vector<8x512xf32> to vector<8x128xf32>
    %38 = math.tanh %37 : vector<8x128xf32>
    %39 = vector.extract_strided_slice %20 {offsets = [0, 384], sizes = [8, 128], strides = [1, 1]} : vector<8x512xf32> to vector<8x128xf32>
    %cst_26 = arith.constant 5.000000e-01 : f32
    %40 = vector.broadcast %cst_26 : f32 to vector<8x128xf32>
    %41 = arith.mulf %40, %39 : vector<8x128xf32>
    %42 = math.tanh %41 : vector<8x128xf32>
    %cst_27 = arith.constant 5.000000e-01 : f32
    %43 = vector.broadcast %cst_27 : f32 to vector<8x128xf32>
    %44 = arith.mulf %43, %42 : vector<8x128xf32>
    %cst_28 = arith.constant 5.000000e-01 : f32
    %45 = vector.broadcast %cst_28 : f32 to vector<8x128xf32>
    %46 = arith.addf %44, %45 : vector<8x128xf32>
    %47 = arith.mulf %36, %13 : vector<8x128xf32>
    %48 = arith.mulf %28, %38 : vector<8x128xf32>
    %49 = arith.addf %47, %48 : vector<8x128xf32>
    %50 = math.tanh %49 : vector<8x128xf32>
    %51 = arith.mulf %46, %50 : vector<8x128xf32>
    %c1_i32 = arith.constant 1 : i32
    %52 = arith.index_cast %c1_i32 : i32 to index
    %c0_29 = arith.constant 0 : index
    %c0_30 = arith.constant 0 : index
    %53 = vector.load %arg9[%52, %c0_29, %c0_30] : memref<8x8x512xf32, #tpu.memory_space<vmem>>, vector<1x8x512xf32>
    %54 = vector.shape_cast %53 : vector<1x8x512xf32> to vector<8x512xf32>
    %55 = arith.truncf %51 : vector<8x128xf32> to vector<8x128xbf16>
    %c0_31 = arith.constant 0 : index
    %c0_32 = arith.constant 0 : index
    %56 = vector.load %arg4[%c0_31, %c0_32] : memref<128x512xbf16, #tpu.memory_space<vmem>>, vector<128x512xbf16>
    %cst_33 = arith.constant dense<0.000000e+00> : vector<8x512xf32>
    %57 = tpu.matmul %55, %56, %cst_33 {dimension_numbers = #tpu.dot_dimension_numbers<[1], [0], [0], [1], [0, 0, 1, 1], [], []>} : vector<8x128xbf16>, vector<128x512xbf16>, vector<8x512xf32> -> vector<8x512xf32>
    %58 = arith.addf %54, %57 : vector<8x512xf32>
    %59 = vector.extract_strided_slice %58 {offsets = [0, 0], sizes = [8, 128], strides = [1, 1]} : vector<8x512xf32> to vector<8x128xf32>
    %cst_34 = arith.constant 5.000000e-01 : f32
    %60 = vector.broadcast %cst_34 : f32 to vector<8x128xf32>
    %61 = arith.mulf %60, %59 : vector<8x128xf32>
    %62 = math.tanh %61 : vector<8x128xf32>
    %cst_35 = arith.constant 5.000000e-01 : f32
    %63 = vector.broadcast %cst_35 : f32 to vector<8x128xf32>
    %64 = arith.mulf %63, %62 : vector<8x128xf32>
    %cst_36 = arith.constant 5.000000e-01 : f32
    %65 = vector.broadcast %cst_36 : f32 to vector<8x128xf32>
    %66 = arith.addf %64, %65 : vector<8x128xf32>
    %67 = vector.extract_strided_slice %58 {offsets = [0, 128], sizes = [8, 128], strides = [1, 1]} : vector<8x512xf32> to vector<8x128xf32>
    %cst_37 = arith.constant 5.000000e-01 : f32
    %68 = vector.broadcast %cst_37 : f32 to vector<8x128xf32>
    %69 = arith.mulf %68, %67 : vector<8x128xf32>
    %70 = math.tanh %69 : vector<8x128xf32>
    %cst_38 = arith.constant 5.000000e-01 : f32
    %71 = vector.broadcast %cst_38 : f32 to vector<8x128xf32>
    %72 = arith.mulf %71, %70 : vector<8x128xf32>
    %cst_39 = arith.constant 5.000000e-01 : f32
    %73 = vector.broadcast %cst_39 : f32 to vector<8x128xf32>
    %74 = arith.addf %72, %73 : vector<8x128xf32>
    %75 = vector.extract_strided_slice %58 {offsets = [0, 256], sizes = [8, 128], strides = [1, 1]} : vector<8x512xf32> to vector<8x128xf32>
    %76 = math.tanh %75 : vector<8x128xf32>
    %77 = vector.extract_strided_slice %58 {offsets = [0, 384], sizes = [8, 128], strides = [1, 1]} : vector<8x512xf32> to vector<8x128xf32>
    %cst_40 = arith.constant 5.000000e-01 : f32
    %78 = vector.broadcast %cst_40 : f32 to vector<8x128xf32>
    %79 = arith.mulf %78, %77 : vector<8x128xf32>
    %80 = math.tanh %79 : vector<8x128xf32>
    %cst_41 = arith.constant 5.000000e-01 : f32
    %81 = vector.broadcast %cst_41 : f32 to vector<8x128xf32>
    %82 = arith.mulf %81, %80 : vector<8x128xf32>
    %cst_42 = arith.constant 5.000000e-01 : f32
    %83 = vector.broadcast %cst_42 : f32 to vector<8x128xf32>
    %84 = arith.addf %82, %83 : vector<8x128xf32>
    %85 = arith.mulf %74, %49 : vector<8x128xf32>
    %86 = arith.mulf %66, %76 : vector<8x128xf32>
    %87 = arith.addf %85, %86 : vector<8x128xf32>
    %88 = math.tanh %87 : vector<8x128xf32>
    %89 = arith.mulf %84, %88 : vector<8x128xf32>
    %c2_i32 = arith.constant 2 : i32
    %90 = arith.index_cast %c2_i32 : i32 to index
    %c0_43 = arith.constant 0 : index
    %c0_44 = arith.constant 0 : index
    %91 = vector.load %arg9[%90, %c0_43, %c0_44] : memref<8x8x512xf32, #tpu.memory_space<vmem>>, vector<1x8x512xf32>
    %92 = vector.shape_cast %91 : vector<1x8x512xf32> to vector<8x512xf32>
    %93 = arith.truncf %89 : vector<8x128xf32> to vector<8x128xbf16>
    %c0_45 = arith.constant 0 : index
    %c0_46 = arith.constant 0 : index
    %94 = vector.load %arg4[%c0_45, %c0_46] : memref<128x512xbf16, #tpu.memory_space<vmem>>, vector<128x512xbf16>
    %cst_47 = arith.constant dense<0.000000e+00> : vector<8x512xf32>
    %95 = tpu.matmul %93, %94, %cst_47 {dimension_numbers = #tpu.dot_dimension_numbers<[1], [0], [0], [1], [0, 0, 1, 1], [], []>} : vector<8x128xbf16>, vector<128x512xbf16>, vector<8x512xf32> -> vector<8x512xf32>
    %96 = arith.addf %92, %95 : vector<8x512xf32>
    %97 = vector.extract_strided_slice %96 {offsets = [0, 0], sizes = [8, 128], strides = [1, 1]} : vector<8x512xf32> to vector<8x128xf32>
    %cst_48 = arith.constant 5.000000e-01 : f32
    %98 = vector.broadcast %cst_48 : f32 to vector<8x128xf32>
    %99 = arith.mulf %98, %97 : vector<8x128xf32>
    %100 = math.tanh %99 : vector<8x128xf32>
    %cst_49 = arith.constant 5.000000e-01 : f32
    %101 = vector.broadcast %cst_49 : f32 to vector<8x128xf32>
    %102 = arith.mulf %101, %100 : vector<8x128xf32>
    %cst_50 = arith.constant 5.000000e-01 : f32
    %103 = vector.broadcast %cst_50 : f32 to vector<8x128xf32>
    %104 = arith.addf %102, %103 : vector<8x128xf32>
    %105 = vector.extract_strided_slice %96 {offsets = [0, 128], sizes = [8, 128], strides = [1, 1]} : vector<8x512xf32> to vector<8x128xf32>
    %cst_51 = arith.constant 5.000000e-01 : f32
    %106 = vector.broadcast %cst_51 : f32 to vector<8x128xf32>
    %107 = arith.mulf %106, %105 : vector<8x128xf32>
    %108 = math.tanh %107 : vector<8x128xf32>
    %cst_52 = arith.constant 5.000000e-01 : f32
    %109 = vector.broadcast %cst_52 : f32 to vector<8x128xf32>
    %110 = arith.mulf %109, %108 : vector<8x128xf32>
    %cst_53 = arith.constant 5.000000e-01 : f32
    %111 = vector.broadcast %cst_53 : f32 to vector<8x128xf32>
    %112 = arith.addf %110, %111 : vector<8x128xf32>
    %113 = vector.extract_strided_slice %96 {offsets = [0, 256], sizes = [8, 128], strides = [1, 1]} : vector<8x512xf32> to vector<8x128xf32>
    %114 = math.tanh %113 : vector<8x128xf32>
    %115 = vector.extract_strided_slice %96 {offsets = [0, 384], sizes = [8, 128], strides = [1, 1]} : vector<8x512xf32> to vector<8x128xf32>
    %cst_54 = arith.constant 5.000000e-01 : f32
    %116 = vector.broadcast %cst_54 : f32 to vector<8x128xf32>
    %117 = arith.mulf %116, %115 : vector<8x128xf32>
    %118 = math.tanh %117 : vector<8x128xf32>
    %cst_55 = arith.constant 5.000000e-01 : f32
    %119 = vector.broadcast %cst_55 : f32 to vector<8x128xf32>
    %120 = arith.mulf %119, %118 : vector<8x128xf32>
    %cst_56 = arith.constant 5.000000e-01 : f32
    %121 = vector.broadcast %cst_56 : f32 to vector<8x128xf32>
    %122 = arith.addf %120, %121 : vector<8x128xf32>
    %123 = arith.mulf %112, %87 : vector<8x128xf32>
    %124 = arith.mulf %104, %114 : vector<8x128xf32>
    %125 = arith.addf %123, %124 : vector<8x128xf32>
    %126 = math.tanh %125 : vector<8x128xf32>
    %127 = arith.mulf %122, %126 : vector<8x128xf32>
    %c3_i32 = arith.constant 3 : i32
    %128 = arith.index_cast %c3_i32 : i32 to index
    %c0_57 = arith.constant 0 : index
    %c0_58 = arith.constant 0 : index
    %129 = vector.load %arg9[%128, %c0_57, %c0_58] : memref<8x8x512xf32, #tpu.memory_space<vmem>>, vector<1x8x512xf32>
    %130 = vector.shape_cast %129 : vector<1x8x512xf32> to vector<8x512xf32>
    %131 = arith.truncf %127 : vector<8x128xf32> to vector<8x128xbf16>
    %c0_59 = arith.constant 0 : index
    %c0_60 = arith.constant 0 : index
    %132 = vector.load %arg4[%c0_59, %c0_60] : memref<128x512xbf16, #tpu.memory_space<vmem>>, vector<128x512xbf16>
    %cst_61 = arith.constant dense<0.000000e+00> : vector<8x512xf32>
    %133 = tpu.matmul %131, %132, %cst_61 {dimension_numbers = #tpu.dot_dimension_numbers<[1], [0], [0], [1], [0, 0, 1, 1], [], []>} : vector<8x128xbf16>, vector<128x512xbf16>, vector<8x512xf32> -> vector<8x512xf32>
    %134 = arith.addf %130, %133 : vector<8x512xf32>
    %135 = vector.extract_strided_slice %134 {offsets = [0, 0], sizes = [8, 128], strides = [1, 1]} : vector<8x512xf32> to vector<8x128xf32>
    %cst_62 = arith.constant 5.000000e-01 : f32
    %136 = vector.broadcast %cst_62 : f32 to vector<8x128xf32>
    %137 = arith.mulf %136, %135 : vector<8x128xf32>
    %138 = math.tanh %137 : vector<8x128xf32>
    %cst_63 = arith.constant 5.000000e-01 : f32
    %139 = vector.broadcast %cst_63 : f32 to vector<8x128xf32>
    %140 = arith.mulf %139, %138 : vector<8x128xf32>
    %cst_64 = arith.constant 5.000000e-01 : f32
    %141 = vector.broadcast %cst_64 : f32 to vector<8x128xf32>
    %142 = arith.addf %140, %141 : vector<8x128xf32>
    %143 = vector.extract_strided_slice %134 {offsets = [0, 128], sizes = [8, 128], strides = [1, 1]} : vector<8x512xf32> to vector<8x128xf32>
    %cst_65 = arith.constant 5.000000e-01 : f32
    %144 = vector.broadcast %cst_65 : f32 to vector<8x128xf32>
    %145 = arith.mulf %144, %143 : vector<8x128xf32>
    %146 = math.tanh %145 : vector<8x128xf32>
    %cst_66 = arith.constant 5.000000e-01 : f32
    %147 = vector.broadcast %cst_66 : f32 to vector<8x128xf32>
    %148 = arith.mulf %147, %146 : vector<8x128xf32>
    %cst_67 = arith.constant 5.000000e-01 : f32
    %149 = vector.broadcast %cst_67 : f32 to vector<8x128xf32>
    %150 = arith.addf %148, %149 : vector<8x128xf32>
    %151 = vector.extract_strided_slice %134 {offsets = [0, 256], sizes = [8, 128], strides = [1, 1]} : vector<8x512xf32> to vector<8x128xf32>
    %152 = math.tanh %151 : vector<8x128xf32>
    %153 = vector.extract_strided_slice %134 {offsets = [0, 384], sizes = [8, 128], strides = [1, 1]} : vector<8x512xf32> to vector<8x128xf32>
    %cst_68 = arith.constant 5.000000e-01 : f32
    %154 = vector.broadcast %cst_68 : f32 to vector<8x128xf32>
    %155 = arith.mulf %154, %153 : vector<8x128xf32>
    %156 = math.tanh %155 : vector<8x128xf32>
    %cst_69 = arith.constant 5.000000e-01 : f32
    %157 = vector.broadcast %cst_69 : f32 to vector<8x128xf32>
    %158 = arith.mulf %157, %156 : vector<8x128xf32>
    %cst_70 = arith.constant 5.000000e-01 : f32
    %159 = vector.broadcast %cst_70 : f32 to vector<8x128xf32>
    %160 = arith.addf %158, %159 : vector<8x128xf32>
    %161 = arith.mulf %150, %125 : vector<8x128xf32>
    %162 = arith.mulf %142, %152 : vector<8x128xf32>
    %163 = arith.addf %161, %162 : vector<8x128xf32>
    %164 = math.tanh %163 : vector<8x128xf32>
    %165 = arith.mulf %160, %164 : vector<8x128xf32>
    %c4_i32 = arith.constant 4 : i32
    %166 = arith.index_cast %c4_i32 : i32 to index
    %c0_71 = arith.constant 0 : index
    %c0_72 = arith.constant 0 : index
    %167 = vector.load %arg9[%166, %c0_71, %c0_72] : memref<8x8x512xf32, #tpu.memory_space<vmem>>, vector<1x8x512xf32>
    %168 = vector.shape_cast %167 : vector<1x8x512xf32> to vector<8x512xf32>
    %169 = arith.truncf %165 : vector<8x128xf32> to vector<8x128xbf16>
    %c0_73 = arith.constant 0 : index
    %c0_74 = arith.constant 0 : index
    %170 = vector.load %arg4[%c0_73, %c0_74] : memref<128x512xbf16, #tpu.memory_space<vmem>>, vector<128x512xbf16>
    %cst_75 = arith.constant dense<0.000000e+00> : vector<8x512xf32>
    %171 = tpu.matmul %169, %170, %cst_75 {dimension_numbers = #tpu.dot_dimension_numbers<[1], [0], [0], [1], [0, 0, 1, 1], [], []>} : vector<8x128xbf16>, vector<128x512xbf16>, vector<8x512xf32> -> vector<8x512xf32>
    %172 = arith.addf %168, %171 : vector<8x512xf32>
    %173 = vector.extract_strided_slice %172 {offsets = [0, 0], sizes = [8, 128], strides = [1, 1]} : vector<8x512xf32> to vector<8x128xf32>
    %cst_76 = arith.constant 5.000000e-01 : f32
    %174 = vector.broadcast %cst_76 : f32 to vector<8x128xf32>
    %175 = arith.mulf %174, %173 : vector<8x128xf32>
    %176 = math.tanh %175 : vector<8x128xf32>
    %cst_77 = arith.constant 5.000000e-01 : f32
    %177 = vector.broadcast %cst_77 : f32 to vector<8x128xf32>
    %178 = arith.mulf %177, %176 : vector<8x128xf32>
    %cst_78 = arith.constant 5.000000e-01 : f32
    %179 = vector.broadcast %cst_78 : f32 to vector<8x128xf32>
    %180 = arith.addf %178, %179 : vector<8x128xf32>
    %181 = vector.extract_strided_slice %172 {offsets = [0, 128], sizes = [8, 128], strides = [1, 1]} : vector<8x512xf32> to vector<8x128xf32>
    %cst_79 = arith.constant 5.000000e-01 : f32
    %182 = vector.broadcast %cst_79 : f32 to vector<8x128xf32>
    %183 = arith.mulf %182, %181 : vector<8x128xf32>
    %184 = math.tanh %183 : vector<8x128xf32>
    %cst_80 = arith.constant 5.000000e-01 : f32
    %185 = vector.broadcast %cst_80 : f32 to vector<8x128xf32>
    %186 = arith.mulf %185, %184 : vector<8x128xf32>
    %cst_81 = arith.constant 5.000000e-01 : f32
    %187 = vector.broadcast %cst_81 : f32 to vector<8x128xf32>
    %188 = arith.addf %186, %187 : vector<8x128xf32>
    %189 = vector.extract_strided_slice %172 {offsets = [0, 256], sizes = [8, 128], strides = [1, 1]} : vector<8x512xf32> to vector<8x128xf32>
    %190 = math.tanh %189 : vector<8x128xf32>
    %191 = vector.extract_strided_slice %172 {offsets = [0, 384], sizes = [8, 128], strides = [1, 1]} : vector<8x512xf32> to vector<8x128xf32>
    %cst_82 = arith.constant 5.000000e-01 : f32
    %192 = vector.broadcast %cst_82 : f32 to vector<8x128xf32>
    %193 = arith.mulf %192, %191 : vector<8x128xf32>
    %194 = math.tanh %193 : vector<8x128xf32>
    %cst_83 = arith.constant 5.000000e-01 : f32
    %195 = vector.broadcast %cst_83 : f32 to vector<8x128xf32>
    %196 = arith.mulf %195, %194 : vector<8x128xf32>
    %cst_84 = arith.constant 5.000000e-01 : f32
    %197 = vector.broadcast %cst_84 : f32 to vector<8x128xf32>
    %198 = arith.addf %196, %197 : vector<8x128xf32>
    %199 = arith.mulf %188, %163 : vector<8x128xf32>
    %200 = arith.mulf %180, %190 : vector<8x128xf32>
    %201 = arith.addf %199, %200 : vector<8x128xf32>
    %202 = math.tanh %201 : vector<8x128xf32>
    %203 = arith.mulf %198, %202 : vector<8x128xf32>
    %c5_i32 = arith.constant 5 : i32
    %204 = arith.index_cast %c5_i32 : i32 to index
    %c0_85 = arith.constant 0 : index
    %c0_86 = arith.constant 0 : index
    %205 = vector.load %arg9[%204, %c0_85, %c0_86] : memref<8x8x512xf32, #tpu.memory_space<vmem>>, vector<1x8x512xf32>
    %206 = vector.shape_cast %205 : vector<1x8x512xf32> to vector<8x512xf32>
    %207 = arith.truncf %203 : vector<8x128xf32> to vector<8x128xbf16>
    %c0_87 = arith.constant 0 : index
    %c0_88 = arith.constant 0 : index
    %208 = vector.load %arg4[%c0_87, %c0_88] : memref<128x512xbf16, #tpu.memory_space<vmem>>, vector<128x512xbf16>
    %cst_89 = arith.constant dense<0.000000e+00> : vector<8x512xf32>
    %209 = tpu.matmul %207, %208, %cst_89 {dimension_numbers = #tpu.dot_dimension_numbers<[1], [0], [0], [1], [0, 0, 1, 1], [], []>} : vector<8x128xbf16>, vector<128x512xbf16>, vector<8x512xf32> -> vector<8x512xf32>
    %210 = arith.addf %206, %209 : vector<8x512xf32>
    %211 = vector.extract_strided_slice %210 {offsets = [0, 0], sizes = [8, 128], strides = [1, 1]} : vector<8x512xf32> to vector<8x128xf32>
    %cst_90 = arith.constant 5.000000e-01 : f32
    %212 = vector.broadcast %cst_90 : f32 to vector<8x128xf32>
    %213 = arith.mulf %212, %211 : vector<8x128xf32>
    %214 = math.tanh %213 : vector<8x128xf32>
    %cst_91 = arith.constant 5.000000e-01 : f32
    %215 = vector.broadcast %cst_91 : f32 to vector<8x128xf32>
    %216 = arith.mulf %215, %214 : vector<8x128xf32>
    %cst_92 = arith.constant 5.000000e-01 : f32
    %217 = vector.broadcast %cst_92 : f32 to vector<8x128xf32>
    %218 = arith.addf %216, %217 : vector<8x128xf32>
    %219 = vector.extract_strided_slice %210 {offsets = [0, 128], sizes = [8, 128], strides = [1, 1]} : vector<8x512xf32> to vector<8x128xf32>
    %cst_93 = arith.constant 5.000000e-01 : f32
    %220 = vector.broadcast %cst_93 : f32 to vector<8x128xf32>
    %221 = arith.mulf %220, %219 : vector<8x128xf32>
    %222 = math.tanh %221 : vector<8x128xf32>
    %cst_94 = arith.constant 5.000000e-01 : f32
    %223 = vector.broadcast %cst_94 : f32 to vector<8x128xf32>
    %224 = arith.mulf %223, %222 : vector<8x128xf32>
    %cst_95 = arith.constant 5.000000e-01 : f32
    %225 = vector.broadcast %cst_95 : f32 to vector<8x128xf32>
    %226 = arith.addf %224, %225 : vector<8x128xf32>
    %227 = vector.extract_strided_slice %210 {offsets = [0, 256], sizes = [8, 128], strides = [1, 1]} : vector<8x512xf32> to vector<8x128xf32>
    %228 = math.tanh %227 : vector<8x128xf32>
    %229 = vector.extract_strided_slice %210 {offsets = [0, 384], sizes = [8, 128], strides = [1, 1]} : vector<8x512xf32> to vector<8x128xf32>
    %cst_96 = arith.constant 5.000000e-01 : f32
    %230 = vector.broadcast %cst_96 : f32 to vector<8x128xf32>
    %231 = arith.mulf %230, %229 : vector<8x128xf32>
    %232 = math.tanh %231 : vector<8x128xf32>
    %cst_97 = arith.constant 5.000000e-01 : f32
    %233 = vector.broadcast %cst_97 : f32 to vector<8x128xf32>
    %234 = arith.mulf %233, %232 : vector<8x128xf32>
    %cst_98 = arith.constant 5.000000e-01 : f32
    %235 = vector.broadcast %cst_98 : f32 to vector<8x128xf32>
    %236 = arith.addf %234, %235 : vector<8x128xf32>
    %237 = arith.mulf %226, %201 : vector<8x128xf32>
    %238 = arith.mulf %218, %228 : vector<8x128xf32>
    %239 = arith.addf %237, %238 : vector<8x128xf32>
    %240 = math.tanh %239 : vector<8x128xf32>
    %241 = arith.mulf %236, %240 : vector<8x128xf32>
    %c6_i32 = arith.constant 6 : i32
    %242 = arith.index_cast %c6_i32 : i32 to index
    %c0_99 = arith.constant 0 : index
    %c0_100 = arith.constant 0 : index
    %243 = vector.load %arg9[%242, %c0_99, %c0_100] : memref<8x8x512xf32, #tpu.memory_space<vmem>>, vector<1x8x512xf32>
    %244 = vector.shape_cast %243 : vector<1x8x512xf32> to vector<8x512xf32>
    %245 = arith.truncf %241 : vector<8x128xf32> to vector<8x128xbf16>
    %c0_101 = arith.constant 0 : index
    %c0_102 = arith.constant 0 : index
    %246 = vector.load %arg4[%c0_101, %c0_102] : memref<128x512xbf16, #tpu.memory_space<vmem>>, vector<128x512xbf16>
    %cst_103 = arith.constant dense<0.000000e+00> : vector<8x512xf32>
    %247 = tpu.matmul %245, %246, %cst_103 {dimension_numbers = #tpu.dot_dimension_numbers<[1], [0], [0], [1], [0, 0, 1, 1], [], []>} : vector<8x128xbf16>, vector<128x512xbf16>, vector<8x512xf32> -> vector<8x512xf32>
    %248 = arith.addf %244, %247 : vector<8x512xf32>
    %249 = vector.extract_strided_slice %248 {offsets = [0, 0], sizes = [8, 128], strides = [1, 1]} : vector<8x512xf32> to vector<8x128xf32>
    %cst_104 = arith.constant 5.000000e-01 : f32
    %250 = vector.broadcast %cst_104 : f32 to vector<8x128xf32>
    %251 = arith.mulf %250, %249 : vector<8x128xf32>
    %252 = math.tanh %251 : vector<8x128xf32>
    %cst_105 = arith.constant 5.000000e-01 : f32
    %253 = vector.broadcast %cst_105 : f32 to vector<8x128xf32>
    %254 = arith.mulf %253, %252 : vector<8x128xf32>
    %cst_106 = arith.constant 5.000000e-01 : f32
    %255 = vector.broadcast %cst_106 : f32 to vector<8x128xf32>
    %256 = arith.addf %254, %255 : vector<8x128xf32>
    %257 = vector.extract_strided_slice %248 {offsets = [0, 128], sizes = [8, 128], strides = [1, 1]} : vector<8x512xf32> to vector<8x128xf32>
    %cst_107 = arith.constant 5.000000e-01 : f32
    %258 = vector.broadcast %cst_107 : f32 to vector<8x128xf32>
    %259 = arith.mulf %258, %257 : vector<8x128xf32>
    %260 = math.tanh %259 : vector<8x128xf32>
    %cst_108 = arith.constant 5.000000e-01 : f32
    %261 = vector.broadcast %cst_108 : f32 to vector<8x128xf32>
    %262 = arith.mulf %261, %260 : vector<8x128xf32>
    %cst_109 = arith.constant 5.000000e-01 : f32
    %263 = vector.broadcast %cst_109 : f32 to vector<8x128xf32>
    %264 = arith.addf %262, %263 : vector<8x128xf32>
    %265 = vector.extract_strided_slice %248 {offsets = [0, 256], sizes = [8, 128], strides = [1, 1]} : vector<8x512xf32> to vector<8x128xf32>
    %266 = math.tanh %265 : vector<8x128xf32>
    %267 = vector.extract_strided_slice %248 {offsets = [0, 384], sizes = [8, 128], strides = [1, 1]} : vector<8x512xf32> to vector<8x128xf32>
    %cst_110 = arith.constant 5.000000e-01 : f32
    %268 = vector.broadcast %cst_110 : f32 to vector<8x128xf32>
    %269 = arith.mulf %268, %267 : vector<8x128xf32>
    %270 = math.tanh %269 : vector<8x128xf32>
    %cst_111 = arith.constant 5.000000e-01 : f32
    %271 = vector.broadcast %cst_111 : f32 to vector<8x128xf32>
    %272 = arith.mulf %271, %270 : vector<8x128xf32>
    %cst_112 = arith.constant 5.000000e-01 : f32
    %273 = vector.broadcast %cst_112 : f32 to vector<8x128xf32>
    %274 = arith.addf %272, %273 : vector<8x128xf32>
    %275 = arith.mulf %264, %239 : vector<8x128xf32>
    %276 = arith.mulf %256, %266 : vector<8x128xf32>
    %277 = arith.addf %275, %276 : vector<8x128xf32>
    %278 = math.tanh %277 : vector<8x128xf32>
    %279 = arith.mulf %274, %278 : vector<8x128xf32>
    %c7_i32 = arith.constant 7 : i32
    %280 = arith.index_cast %c7_i32 : i32 to index
    %c0_113 = arith.constant 0 : index
    %c0_114 = arith.constant 0 : index
    %281 = vector.load %arg9[%280, %c0_113, %c0_114] : memref<8x8x512xf32, #tpu.memory_space<vmem>>, vector<1x8x512xf32>
    %282 = vector.shape_cast %281 : vector<1x8x512xf32> to vector<8x512xf32>
    %283 = arith.truncf %279 : vector<8x128xf32> to vector<8x128xbf16>
    %c0_115 = arith.constant 0 : index
    %c0_116 = arith.constant 0 : index
    %284 = vector.load %arg4[%c0_115, %c0_116] : memref<128x512xbf16, #tpu.memory_space<vmem>>, vector<128x512xbf16>
    %cst_117 = arith.constant dense<0.000000e+00> : vector<8x512xf32>
    %285 = tpu.matmul %283, %284, %cst_117 {dimension_numbers = #tpu.dot_dimension_numbers<[1], [0], [0], [1], [0, 0, 1, 1], [], []>} : vector<8x128xbf16>, vector<128x512xbf16>, vector<8x512xf32> -> vector<8x512xf32>
    %286 = arith.addf %282, %285 : vector<8x512xf32>
    %287 = vector.extract_strided_slice %286 {offsets = [0, 0], sizes = [8, 128], strides = [1, 1]} : vector<8x512xf32> to vector<8x128xf32>
    %cst_118 = arith.constant 5.000000e-01 : f32
    %288 = vector.broadcast %cst_118 : f32 to vector<8x128xf32>
    %289 = arith.mulf %288, %287 : vector<8x128xf32>
    %290 = math.tanh %289 : vector<8x128xf32>
    %cst_119 = arith.constant 5.000000e-01 : f32
    %291 = vector.broadcast %cst_119 : f32 to vector<8x128xf32>
    %292 = arith.mulf %291, %290 : vector<8x128xf32>
    %cst_120 = arith.constant 5.000000e-01 : f32
    %293 = vector.broadcast %cst_120 : f32 to vector<8x128xf32>
    %294 = arith.addf %292, %293 : vector<8x128xf32>
    %295 = vector.extract_strided_slice %286 {offsets = [0, 128], sizes = [8, 128], strides = [1, 1]} : vector<8x512xf32> to vector<8x128xf32>
    %cst_121 = arith.constant 5.000000e-01 : f32
    %296 = vector.broadcast %cst_121 : f32 to vector<8x128xf32>
    %297 = arith.mulf %296, %295 : vector<8x128xf32>
    %298 = math.tanh %297 : vector<8x128xf32>
    %cst_122 = arith.constant 5.000000e-01 : f32
    %299 = vector.broadcast %cst_122 : f32 to vector<8x128xf32>
    %300 = arith.mulf %299, %298 : vector<8x128xf32>
    %cst_123 = arith.constant 5.000000e-01 : f32
    %301 = vector.broadcast %cst_123 : f32 to vector<8x128xf32>
    %302 = arith.addf %300, %301 : vector<8x128xf32>
    %303 = vector.extract_strided_slice %286 {offsets = [0, 256], sizes = [8, 128], strides = [1, 1]} : vector<8x512xf32> to vector<8x128xf32>
    %304 = math.tanh %303 : vector<8x128xf32>
    %305 = vector.extract_strided_slice %286 {offsets = [0, 384], sizes = [8, 128], strides = [1, 1]} : vector<8x512xf32> to vector<8x128xf32>
    %cst_124 = arith.constant 5.000000e-01 : f32
    %306 = vector.broadcast %cst_124 : f32 to vector<8x128xf32>
    %307 = arith.mulf %306, %305 : vector<8x128xf32>
    %308 = math.tanh %307 : vector<8x128xf32>
    %cst_125 = arith.constant 5.000000e-01 : f32
    %309 = vector.broadcast %cst_125 : f32 to vector<8x128xf32>
    %310 = arith.mulf %309, %308 : vector<8x128xf32>
    %cst_126 = arith.constant 5.000000e-01 : f32
    %311 = vector.broadcast %cst_126 : f32 to vector<8x128xf32>
    %312 = arith.addf %310, %311 : vector<8x128xf32>
    %313 = arith.mulf %302, %277 : vector<8x128xf32>
    %314 = arith.mulf %294, %304 : vector<8x128xf32>
    %315 = arith.addf %313, %314 : vector<8x128xf32>
    %316 = math.tanh %315 : vector<8x128xf32>
    %317 = arith.mulf %312, %316 : vector<8x128xf32>
    %c8_i32 = arith.constant 8 : i32
    %c0_127 = arith.constant 0 : index
    %c0_128 = arith.constant 0 : index
    %318 = vector.load %arg10[%c0_127, %c0_128] : memref<8x128xf32, #tpu.memory_space<vmem>>, vector<8x128xf32>
    tpu.vector_store %arg10[%c0_127, %c0_128], %317 {strides = array<i32>} : memref<8x128xf32, #tpu.memory_space<vmem>>, vector<8x128xf32>,
    %c0_129 = arith.constant 0 : index
    %c0_130 = arith.constant 0 : index
    %319 = vector.load %arg11[%c0_129, %c0_130] : memref<8x128xf32, #tpu.memory_space<vmem>>, vector<8x128xf32>
    tpu.vector_store %arg11[%c0_129, %c0_130], %315 {strides = array<i32>} : memref<8x128xf32, #tpu.memory_space<vmem>>, vector<8x128xf32>,
    %c0_i32_131 = arith.constant 0 : i32
    %320 = arith.cmpi eq, %arg1, %c0_i32_131 : i32
    %321 = arith.extui %320 : i1 to i32
    %c0_i32_132 = arith.constant 0 : i32
    %322 = arith.cmpi ne, %321, %c0_i32_132 : i32
    scf.if %322 {
      %323 = arith.truncf %317 : vector<8x128xf32> to vector<8x128xbf16>
      %c0_133 = arith.constant 0 : index
      %c0_134 = arith.constant 0 : index
      %324 = vector.load %arg6[%c0_133, %c0_134] : memref<128x128xbf16, #tpu.memory_space<vmem>>, vector<128x128xbf16>
      %cst_135 = arith.constant dense<0.000000e+00> : vector<8x128xf32>
      %325 = tpu.matmul %323, %324, %cst_135 {dimension_numbers = #tpu.dot_dimension_numbers<[1], [0], [0], [1], [0, 0, 1, 1], [], []>} : vector<8x128xbf16>, vector<128x128xbf16>, vector<8x128xf32> -> vector<8x128xf32>
      %c0_136 = arith.constant 0 : index
      %c0_137 = arith.constant 0 : index
      %326 = vector.load %arg7[%c0_136, %c0_137] : memref<1x128xf32, #tpu.memory_space<vmem>>, vector<1x128xf32>
      %327 = vector.broadcast %326 : vector<1x128xf32> to vector<8x128xf32>
      %328 = arith.addf %325, %327 : vector<8x128xf32>
      %c0_138 = arith.constant 0 : index
      %c0_139 = arith.constant 0 : index
      %329 = vector.load %arg8[%c0_138, %c0_139] : memref<8x128xf32, #tpu.memory_space<vmem>>, vector<8x128xf32>
      tpu.vector_store %arg8[%c0_138, %c0_139], %328 {strides = array<i32>} : memref<8x128xf32, #tpu.memory_space<vmem>>, vector<8x128xf32>,
    } else {
    }
    return
  }
  func.func @transform_0(%arg0: i32, %arg1: i32) -> (i32, i32, i32) {
    %c0_i32 = arith.constant 0 : i32
    %c0_i32_0 = arith.constant 0 : i32
    return %arg1, %arg0, %c0_i32 : i32, i32, i32
  }
  func.func @transform_1(%arg0: i32, %arg1: i32) -> (i32, i32) {
    %c0_i32 = arith.constant 0 : i32
    %c0_i32_0 = arith.constant 0 : i32
    %c0_i32_1 = arith.constant 0 : i32
    return %c0_i32, %c0_i32_0 : i32, i32
  }
  func.func @transform_2(%arg0: i32, %arg1: i32) -> (i32, i32) {
    %c0_i32 = arith.constant 0 : i32
    %c0_i32_0 = arith.constant 0 : i32
    %c0_i32_1 = arith.constant 0 : i32
    return %c0_i32, %c0_i32_0 : i32, i32
  }
  func.func @transform_3(%arg0: i32, %arg1: i32) -> (i32, i32) {
    %c0_i32 = arith.constant 0 : i32
    %c0_i32_0 = arith.constant 0 : i32
    %c0_i32_1 = arith.constant 0 : i32
    return %c0_i32, %c0_i32_0 : i32, i32
  }
  func.func @transform_4(%arg0: i32, %arg1: i32) -> (i32, i32) {
    %c0_i32 = arith.constant 0 : i32
    %c0_i32_0 = arith.constant 0 : i32
    %c0_i32_1 = arith.constant 0 : i32
    return %c0_i32, %c0_i32_0 : i32, i32
  }
  func.func @transform_5(%arg0: i32, %arg1: i32) -> (i32, i32) {
    %c0_i32 = arith.constant 0 : i32
    %c0_i32_0 = arith.constant 0 : i32
    %c0_i32_1 = arith.constant 0 : i32
    return %c0_i32, %c0_i32_0 : i32, i32
  }
  func.func @transform_6(%arg0: i32, %arg1: i32) -> (i32, i32) {
    %c0_i32 = arith.constant 0 : i32
    %c0_i32_0 = arith.constant 0 : i32
    return %arg0, %c0_i32 : i32, i32
  }
}

</mosaic_0001>

<llo_original>
// kernel: sentiment_forward.1
$region0: #{sentiment_forward.1}
  #allocation0 [shape = 'u32[]', space=smem, size = 0x4, offset = 0x4, fixed_abs, tag = 'smem constant byte address 0x4 - core index']
  #allocation1 [shape = 'u32[144,128]{1,0:T(1,128)}', space=vmem, size = 0x12000, scoped, tag = 'internal scratch']
  #allocation2 [shape = 'f32[8,8,512]{2,1,0:T(8,128)}', space=vmem, size = 0x20000, scoped, tag = 'scratch operand']
  #allocation3 [shape = 'f32[8,128]{1,0:T(8,128)}', space=vmem, size = 0x1000, scoped, tag = 'scratch operand']
  #allocation4 [shape = 'f32[8,128]{1,0:T(8,128)}', space=vmem, size = 0x1000, scoped, tag = 'scratch operand']
  %s0 = inlined_call_operand.vmem [shape: bf16[8,8,128], index: 0, kind: input, shape index: {}]
  %s1 = inlined_call_operand.vmem [shape: bf16[128,512], index: 1, kind: input, shape index: {}]
  %s2 = inlined_call_operand.vmem [shape: bf16[128,512], index: 2, kind: input, shape index: {}]
  %s3 = inlined_call_operand.vmem [shape: f32[1,512], index: 3, kind: input, shape index: {}]
  %s4 = inlined_call_operand.vmem [shape: bf16[128,128], index: 4, kind: input, shape index: {}]
  %s5 = inlined_call_operand.vmem [shape: f32[1,128], index: 5, kind: input, shape index: {}]
  %s6 = inlined_call_operand.vmem [shape: f32[8,128], index: 6, kind: output, shape index: {}]
  %s7 = sld [smem:[#allocation0]]
  $region42: #{sentiment_forward.1} parent=0
    _
  %s9 = ssub.s32 1, %s7
  %s10 = scalar_select 0, %s9, %s7
  // Predicated region
  $region2: #{sentiment_forward.1} parent=0 // pred_check
    _
  $region3: #{sentiment_forward.1} parent=0 // pred_check_branch
    %12 = sbr.rel (0) target = $region5
  $region4: #{sentiment_forward.1} parent=0 // pred_region
    _
  $region5: #{sentiment_forward.1} parent=0 // pred_fallthru
    _
  // Predicated region
  $region6: #{sentiment_forward.1} parent=0 // pred_check
    _
  $region7: #{sentiment_forward.1} parent=0 // pred_check_branch
    %14 = sbr.rel (0) target = $region9
  $region8: #{sentiment_forward.1} parent=0 // pred_region
    _
  $region9: #{sentiment_forward.1} parent=0 // pred_fallthru
    _
  // Predicated region
  $region10: #{sentiment_forward.1} parent=0 // pred_check
    _
  $region11: #{sentiment_forward.1} parent=0 // pred_check_branch
    %16 = sbr.rel (0) target = $region13
  $region12: #{sentiment_forward.1} parent=0 // pred_region
    _
  $region13: #{sentiment_forward.1} parent=0 // pred_fallthru
    _
  // Predicated region
  $region14: #{sentiment_forward.1} parent=0 // pred_check
    _
  $region15: #{sentiment_forward.1} parent=0 // pred_check_branch
    %18 = sbr.rel (0) target = $region17
  $region16: #{sentiment_forward.1} parent=0 // pred_region
    _
  $region17: #{sentiment_forward.1} parent=0 // pred_fallthru
    _
  // Predicated region
  $region18: #{sentiment_forward.1} parent=0 // pred_check
    _
  $region19: #{sentiment_forward.1} parent=0 // pred_check_branch
    %20 = sbr.rel (0) target = $region21
  $region20: #{sentiment_forward.1} parent=0 // pred_region
    _
  $region21: #{sentiment_forward.1} parent=0 // pred_fallthru
    _
  // Predicated region
  $region22: #{sentiment_forward.1} parent=0 // pred_check
    _
  $region23: #{sentiment_forward.1} parent=0 // pred_check_branch
    %22 = sbr.rel (0) target = $region25
  $region24: #{sentiment_forward.1} parent=0 // pred_region
    _
  $region25: #{sentiment_forward.1} parent=0 // pred_fallthru
    _
  %p24 = scmp.eq.s32.totalorder 0, 0
  // Predicated region
  $region26: #{sentiment_forward.1} parent=0 // pred_check
    %p25 = pneg %p24
  $region27: #{sentiment_forward.1} parent=0 // pred_check_branch
    %27 = sbr.rel (%p25) target = $region29
  $region28: #{sentiment_forward.1} parent=0 // pred_region
    %28 = vst [vmem:[#allocation3] sm:$0xff] 0.0
    %29 = vst [vmem:[#allocation4] sm:$0xff] 0.0
  $region29: #{sentiment_forward.1} parent=0 // pred_fallthru
    _
  %v30 = vld [vmem:[%s0] sm:$0xf]
  %v31 = vld [vmem:[%s0 + $0x4] sm:$0xf]
  %v32 = vld [vmem:[%s0 + $0x8] sm:$0xf]
  %v33 = vld [vmem:[%s0 + $0xc] sm:$0xf]
  %v34 = vld [vmem:[%s0 + $0x10] sm:$0xf]
  %v35 = vld [vmem:[%s0 + $0x14] sm:$0xf]
  %v36 = vld [vmem:[%s0 + $0x18] sm:$0xf]
  %v37 = vld [vmem:[%s0 + $0x1c] sm:$0xf]
  %v38 = vld [vmem:[%s1] sm:$0xff]
  %v39 = vld [vmem:[%s1 + $0x8] sm:$0xff]
  %v40 = vld [vmem:[%s1 + $0x10] sm:$0xff]
  %v41 = vld [vmem:[%s1 + $0x18] sm:$0xff]
  %v42 = vld [vmem:[%s1 + $0x20] sm:$0xff]
  %v43 = vld [vmem:[%s1 + $0x28] sm:$0xff]
  %v44 = vld [vmem:[%s1 + $0x30] sm:$0xff]
  %v45 = vld [vmem:[%s1 + $0x38] sm:$0xff]
  %v46 = vld [vmem:[%s1 + $0x40] sm:$0xff]
  %v47 = vld [vmem:[%s1 + $0x48] sm:$0xff]
  %v48 = vld [vmem:[%s1 + $0x50] sm:$0xff]
  %v49 = vld [vmem:[%s1 + $0x58] sm:$0xff]
  %v50 = vld [vmem:[%s1 + $0x60] sm:$0xff]
  %v51 = vld [vmem:[%s1 + $0x68] sm:$0xff]
  %v52 = vld [vmem:[%s1 + $0x70] sm:$0xff]
  %v53 = vld [vmem:[%s1 + $0x78] sm:$0xff]
  %v54 = vld [vmem:[%s1 + $0x80] sm:$0xff]
  %v55 = vld [vmem:[%s1 + $0x88] sm:$0xff]
  %v56 = vld [vmem:[%s1 + $0x90] sm:$0xff]
  %v57 = vld [vmem:[%s1 + $0x98] sm:$0xff]
  %v58 = vld [vmem:[%s1 + $0xa0] sm:$0xff]
  %v59 = vld [vmem:[%s1 + $0xa8] sm:$0xff]
  %v60 = vld [vmem:[%s1 + $0xb0] sm:$0xff]
  %v61 = vld [vmem:[%s1 + $0xb8] sm:$0xff]
  %v62 = vld [vmem:[%s1 + $0xc0] sm:$0xff]
  %v63 = vld [vmem:[%s1 + $0xc8] sm:$0xff]
  %v64 = vld [vmem:[%s1 + $0xd0] sm:$0xff]
  %v65 = vld [vmem:[%s1 + $0xd8] sm:$0xff]
  %v66 = vld [vmem:[%s1 + $0xe0] sm:$0xff]
  %v67 = vld [vmem:[%s1 + $0xe8] sm:$0xff]
  %v68 = vld [vmem:[%s1 + $0xf0] sm:$0xff]
  %v69 = vld [vmem:[%s1 + $0xf8] sm:$0xff]
  %v70 = vld [vmem:[%s3] sm:$0xf]
  %v72 = vlaneseq
  %v73 = vshrl.u32 %v72, 7
  %v74 = vsub.s32 0, %v73
  %v75 = vrot.slane %v70, %v74
  %v76 = vlaneseq
  %v77 = vshrl.u32 %v76, 7
  %v78 = vsub.s32 1, %v77
  %v79 = vrot.slane %v70, %v78
  %v80 = vlaneseq
  %v81 = vshrl.u32 %v80, 7
  %v82 = vsub.s32 2, %v81
  %v83 = vrot.slane %v70, %v82
  %v84 = vlaneseq
  %v85 = vshrl.u32 %v84, 7
  %v86 = vsub.s32 3, %v85
  %v87 = vrot.slane %v70, %v86
  %v100 = vunpack.c.l.b16 %v30
  %v101 = vunpack.c.l.b16 %v31
  %v102 = vunpack.c.l.b16 %v32
  %v103 = vunpack.c.l.b16 %v33
  %v104 = vunpack.c.l.b16 %v34
  %v105 = vunpack.c.l.b16 %v35
  %v106 = vunpack.c.l.b16 %v36
  %v107 = vunpack.c.l.b16 %v37
  %v108 = vpack.c.b16 %v101, %v100
  %v109 = vpack.c.b16 %v103, %v102
  %v110 = vpack.c.b16 %v105, %v104
  %v111 = vpack.c.b16 %v107, %v106
  %v148 = vunpack.c.l.b16 %v38
  %v149 = vunpack.c.h.b16 %v38
  %v150 = vunpack.c.l.b16 %v39
  %v151 = vunpack.c.h.b16 %v39
  %v152 = vunpack.c.l.b16 %v40
  %v153 = vunpack.c.h.b16 %v40
  %v154 = vunpack.c.l.b16 %v41
  %v155 = vunpack.c.h.b16 %v41
  %v156 = vunpack.c.l.b16 %v42
  %v157 = vunpack.c.h.b16 %v42
  %v158 = vunpack.c.l.b16 %v43
  %v159 = vunpack.c.h.b16 %v43
  %v160 = vunpack.c.l.b16 %v44
  %v161 = vunpack.c.h.b16 %v44
  %v162 = vunpack.c.l.b16 %v45
  %v163 = vunpack.c.h.b16 %v45
  %v164 = vunpack.c.l.b16 %v46
  %v165 = vunpack.c.h.b16 %v46
  %v166 = vunpack.c.l.b16 %v47
  %v167 = vunpack.c.h.b16 %v47
  %v168 = vunpack.c.l.b16 %v48
  %v169 = vunpack.c.h.b16 %v48
  %v170 = vunpack.c.l.b16 %v49
  %v171 = vunpack.c.h.b16 %v49
  %v172 = vunpack.c.l.b16 %v50
  %v173 = vunpack.c.h.b16 %v50
  %v174 = vunpack.c.l.b16 %v51
  %v175 = vunpack.c.h.b16 %v51
  %v176 = vunpack.c.l.b16 %v52
  %v177 = vunpack.c.h.b16 %v52
  %v178 = vunpack.c.l.b16 %v53
  %v179 = vunpack.c.h.b16 %v53
  %v180 = vunpack.c.l.b16 %v54
  %v181 = vunpack.c.h.b16 %v54
  %v182 = vunpack.c.l.b16 %v55
  %v183 = vunpack.c.h.b16 %v55
  %v184 = vunpack.c.l.b16 %v56
  %v185 = vunpack.c.h.b16 %v56
  %v186 = vunpack.c.l.b16 %v57
  %v187 = vunpack.c.h.b16 %v57
  %v188 = vunpack.c.l.b16 %v58
  %v189 = vunpack.c.h.b16 %v58
  %v190 = vunpack.c.l.b16 %v59
  %v191 = vunpack.c.h.b16 %v59
  %v192 = vunpack.c.l.b16 %v60
  %v193 = vunpack.c.h.b16 %v60
  %v194 = vunpack.c.l.b16 %v61
  %v195 = vunpack.c.h.b16 %v61
  %v196 = vunpack.c.l.b16 %v62
  %v197 = vunpack.c.h.b16 %v62
  %v198 = vunpack.c.l.b16 %v63
  %v199 = vunpack.c.h.b16 %v63
  %v200 = vunpack.c.l.b16 %v64
  %v201 = vunpack.c.h.b16 %v64
  %v202 = vunpack.c.l.b16 %v65
  %v203 = vunpack.c.h.b16 %v65
  %v204 = vunpack.c.l.b16 %v66
  %v205 = vunpack.c.h.b16 %v66
  %v206 = vunpack.c.l.b16 %v67
  %v207 = vunpack.c.h.b16 %v67
  %v208 = vunpack.c.l.b16 %v68
  %v209 = vunpack.c.h.b16 %v68
  %v210 = vunpack.c.l.b16 %v69
  %v211 = vunpack.c.h.b16 %v69
  %v212 = vpack.c.b16 %v152, %v148
  %v213 = vpack.c.b16 %v153, %v149
  %v214 = vpack.c.b16 %v154, %v150
  %v215 = vpack.c.b16 %v155, %v151
  %v216 = vpack.c.b16 %v160, %v156
  %v217 = vpack.c.b16 %v161, %v157
  %v218 = vpack.c.b16 %v162, %v158
  %v219 = vpack.c.b16 %v163, %v159
  %v220 = vpack.c.b16 %v168, %v164
  %v221 = vpack.c.b16 %v169, %v165
  %v222 = vpack.c.b16 %v170, %v166
  %v223 = vpack.c.b16 %v171, %v167
  %v224 = vpack.c.b16 %v176, %v172
  %v225 = vpack.c.b16 %v177, %v173
  %v226 = vpack.c.b16 %v178, %v174
  %v227 = vpack.c.b16 %v179, %v175
  %v228 = vpack.c.b16 %v184, %v180
  %v229 = vpack.c.b16 %v185, %v181
  %v230 = vpack.c.b16 %v186, %v182
  %v231 = vpack.c.b16 %v187, %v183
  %v232 = vpack.c.b16 %v192, %v188
  %v233 = vpack.c.b16 %v193, %v189
  %v234 = vpack.c.b16 %v194, %v190
  %v235 = vpack.c.b16 %v195, %v191
  %v236 = vpack.c.b16 %v200, %v196
  %v237 = vpack.c.b16 %v201, %v197
  %v238 = vpack.c.b16 %v202, %v198
  %v239 = vpack.c.b16 %v203, %v199
  %v240 = vpack.c.b16 %v208, %v204
  %v241 = vpack.c.b16 %v209, %v205
  %v242 = vpack.c.b16 %v210, %v206
  %v243 = vpack.c.b16 %v211, %v207
  %276 = vmatprep.subr.bf16.mxu0 %v241
  %277 = vmatpush1.bf16.msra.mxu0 %v240
  %278 = vmatprep.subr.bf16.mxu0 %v237
  %279 = vmatpush1.bf16.msra.mxu0 %v236
  %280 = vmatprep.subr.bf16.mxu0 %v233
  %281 = vmatpush1.bf16.msra.mxu0 %v232
  %282 = vmatprep.subr.bf16.mxu0 %v229
  %283 = vmatpush1.bf16.msra.mxu0 %v228
  %284 = vmatprep.subr.bf16.mxu0 %v225
  %285 = vmatpush1.bf16.msra.mxu0 %v224
  %286 = vmatprep.subr.bf16.mxu0 %v221
  %287 = vmatpush1.bf16.msra.mxu0 %v220
  %288 = vmatprep.subr.bf16.mxu0 %v217
  %289 = vmatpush1.bf16.msra.mxu0 %v216
  %290 = vmatprep.subr.bf16.mxu0 %v213
  %291 = vmatpush1.bf16.msra.mxu0 %v212
  %292 = vmatprep.subr.bf16.mxu0 0
  %293 = vmatpush2.bf16.msra.mxu0 0
  %294 = vmatprep.subr.bf16.mxu0 0
  %295 = vmatpush2.bf16.msra.mxu0 0
  %296 = vmatprep.subr.bf16.mxu0 0
  %297 = vmatpush2.bf16.msra.mxu0 0
  %298 = vmatprep.subr.bf16.mxu0 0
  %299 = vmatpush2.bf16.msra.mxu0 0
  %300 = vmatprep.subr.bf16.mxu0 0
  %301 = vmatpush2.bf16.msra.mxu0 0
  %302 = vmatprep.subr.bf16.mxu0 0
  %303 = vmatpush2.bf16.msra.mxu0 0
  %304 = vmatprep.subr.bf16.mxu0 0
  %305 = vmatpush2.bf16.msra.mxu0 0
  %306 = vmatprep.subr.bf16.mxu0 0
  %307 = vmatpush2.bf16.msra.mxu0 0
  %308 = vmatprep.mubr.bf16.mxu0 0
  %309 = vmatmul.mubr.bf16.gmra.mxu0 %v108
  %v310 = vpop.f32.mrf.mxu0
  %v311 = vadd.f32 %v75, %v310
  %v312 = vpop.f32.mrf.mxu0
  %v313 = vadd.f32 %v79, %v312
  %v314 = vpop.f32.mrf.mxu0
  %v315 = vadd.f32 %v75, %v314
  %v316 = vpop.f32.mrf.mxu0
  %v317 = vadd.f32 %v79, %v316
  %318 = vmatprep.mubr.bf16.mxu0 0
  %319 = vmatmul.mubr.bf16.gmra.mxu0 %v109
  %v320 = vpop.f32.mrf.mxu0
  %v321 = vadd.f32 %v75, %v320
  %v322 = vpop.f32.mrf.mxu0
  %v323 = vadd.f32 %v79, %v322
  %v324 = vpop.f32.mrf.mxu0
  %v325 = vadd.f32 %v75, %v324
  %v326 = vpop.f32.mrf.mxu0
  %v327 = vadd.f32 %v79, %v326
  %328 = vmatprep.mubr.bf16.mxu0 0
  %329 = vmatmul.mubr.bf16.gmra.mxu0 %v110
  %v330 = vpop.f32.mrf.mxu0
  %v331 = vadd.f32 %v75, %v330
  %v332 = vpop.f32.mrf.mxu0
  %v333 = vadd.f32 %v79, %v332
  %v334 = vpop.f32.mrf.mxu0
  %v335 = vadd.f32 %v75, %v334
  %v336 = vpop.f32.mrf.mxu0
  %v337 = vadd.f32 %v79, %v336
  %338 = vmatprep.mubr.bf16.mxu0 0
  %339 = vmatmul.mubr.bf16.gmra.mxu0 %v111
  %v340 = vpop.f32.mrf.mxu0
  %v341 = vadd.f32 %v75, %v340
  %v342 = vpop.f32.mrf.mxu0
  %v343 = vadd.f32 %v79, %v342
  %v344 = vpop.f32.mrf.mxu0
  %v345 = vadd.f32 %v75, %v344
  %v346 = vpop.f32.mrf.mxu0
  %v347 = vadd.f32 %v79, %v346
  %348 = vdwg.mxu0
  %349 = vmatprep.subr.bf16.mxu0 %v243
  %350 = vmatpush1.bf16.msra.mxu0 %v242
  %351 = vmatprep.subr.bf16.mxu0 %v239
  %352 = vmatpush1.bf16.msra.mxu0 %v238
  %353 = vmatprep.subr.bf16.mxu0 %v235
  %354 = vmatpush1.bf16.msra.mxu0 %v234
  %355 = vmatprep.subr.bf16.mxu0 %v231
  %356 = vmatpush1.bf16.msra.mxu0 %v230
  %357 = vmatprep.subr.bf16.mxu0 %v227
  %358 = vmatpush1.bf16.msra.mxu0 %v226
  %359 = vmatprep.subr.bf16.mxu0 %v223
  %360 = vmatpush1.bf16.msra.mxu0 %v222
  %361 = vmatprep.subr.bf16.mxu0 %v219
  %362 = vmatpush1.bf16.msra.mxu0 %v218
  %363 = vmatprep.subr.bf16.mxu0 %v215
  %364 = vmatpush1.bf16.msra.mxu0 %v214
  %365 = vmatprep.subr.bf16.mxu0 0
  %366 = vmatpush2.bf16.msra.mxu0 0
  %367 = vmatprep.subr.bf16.mxu0 0
  %368 = vmatpush2.bf16.msra.mxu0 0
  %369 = vmatprep.subr.bf16.mxu0 0
  %370 = vmatpush2.bf16.msra.mxu0 0
  %371 = vmatprep.subr.bf16.mxu0 0
  %372 = vmatpush2.bf16.msra.mxu0 0
  %373 = vmatprep.subr.bf16.mxu0 0
  %374 = vmatpush2.bf16.msra.mxu0 0
  %375 = vmatprep.subr.bf16.mxu0 0
  %376 = vmatpush2.bf16.msra.mxu0 0
  %377 = vmatprep.subr.bf16.mxu0 0
  %378 = vmatpush2.bf16.msra.mxu0 0
  %379 = vmatprep.subr.bf16.mxu0 0
  %380 = vmatpush2.bf16.msra.mxu0 0
  %381 = vmatprep.mubr.bf16.mxu0 0
  %382 = vmatmul.mubr.bf16.gmra.mxu0 %v108
  %v383 = vpop.f32.mrf.mxu0
  %v384 = vadd.f32 %v83, %v383
  %v385 = vpop.f32.mrf.mxu0
  %v386 = vadd.f32 %v87, %v385
  %v387 = vpop.f32.mrf.mxu0
  %v388 = vadd.f32 %v83, %v387
  %v389 = vpop.f32.mrf.mxu0
  %v390 = vadd.f32 %v87, %v389
  %391 = vmatprep.mubr.bf16.mxu0 0
  %392 = vmatmul.mubr.bf16.gmra.mxu0 %v109
  %v393 = vpop.f32.mrf.mxu0
  %v394 = vadd.f32 %v83, %v393
  %v395 = vpop.f32.mrf.mxu0
  %v396 = vadd.f32 %v87, %v395
  %v397 = vpop.f32.mrf.mxu0
  %v398 = vadd.f32 %v83, %v397
  %v399 = vpop.f32.mrf.mxu0
  %v400 = vadd.f32 %v87, %v399
  %401 = vmatprep.mubr.bf16.mxu0 0
  %402 = vmatmul.mubr.bf16.gmra.mxu0 %v110
  %v403 = vpop.f32.mrf.mxu0
  %v404 = vadd.f32 %v83, %v403
  %v405 = vpop.f32.mrf.mxu0
  %v406 = vadd.f32 %v87, %v405
  %v407 = vpop.f32.mrf.mxu0
  %v408 = vadd.f32 %v83, %v407
  %v409 = vpop.f32.mrf.mxu0
  %v410 = vadd.f32 %v87, %v409
  %411 = vmatprep.mubr.bf16.mxu0 0
  %412 = vmatmul.mubr.bf16.gmra.mxu0 %v111
  %v413 = vpop.f32.mrf.mxu0
  %v414 = vadd.f32 %v83, %v413
  %v415 = vpop.f32.mrf.mxu0
  %v416 = vadd.f32 %v87, %v415
  %v417 = vpop.f32.mrf.mxu0
  %v418 = vadd.f32 %v83, %v417
  %v419 = vpop.f32.mrf.mxu0
  %v420 = vadd.f32 %v87, %v419
  %421 = vdwg.mxu0
  %422 = vst [vmem:[#allocation2] sm:$0xff] %v311
  %423 = vst [vmem:[#allocation2 + $0x8] sm:$0xff] %v313
  %424 = vst [vmem:[#allocation2 + $0x10] sm:$0xff] %v384
  %425 = vst [vmem:[#allocation2 + $0x18] sm:$0xff] %v386
  %426 = vst [vmem:[#allocation2 + $0x20] sm:$0xff] %v315
  %427 = vst [vmem:[#allocation2 + $0x28] sm:$0xff] %v317
  %428 = vst [vmem:[#allocation2 + $0x30] sm:$0xff] %v388
  %429 = vst [vmem:[#allocation2 + $0x38] sm:$0xff] %v390
  %430 = vst [vmem:[#allocation2 + $0x40] sm:$0xff] %v321
  %431 = vst [vmem:[#allocation2 + $0x48] sm:$0xff] %v323
  %432 = vst [vmem:[#allocation2 + $0x50] sm:$0xff] %v394
  %433 = vst [vmem:[#allocation2 + $0x58] sm:$0xff] %v396
  %434 = vst [vmem:[#allocation2 + $0x60] sm:$0xff] %v325
  %435 = vst [vmem:[#allocation2 + $0x68] sm:$0xff] %v327
  %436 = vst [vmem:[#allocation2 + $0x70] sm:$0xff] %v398
  %437 = vst [vmem:[#allocation2 + $0x78] sm:$0xff] %v400
  %438 = vst [vmem:[#allocation2 + $0x80] sm:$0xff] %v331
  %439 = vst [vmem:[#allocation2 + $0x88] sm:$0xff] %v333
  %440 = vst [vmem:[#allocation2 + $0x90] sm:$0xff] %v404
  %441 = vst [vmem:[#allocation2 + $0x98] sm:$0xff] %v406
  %442 = vst [vmem:[#allocation2 + $0xa0] sm:$0xff] %v335
  %443 = vst [vmem:[#allocation2 + $0xa8] sm:$0xff] %v337
  %444 = vst [vmem:[#allocation2 + $0xb0] sm:$0xff] %v408
  %445 = vst [vmem:[#allocation2 + $0xb8] sm:$0xff] %v410
  %446 = vst [vmem:[#allocation2 + $0xc0] sm:$0xff] %v341
  %447 = vst [vmem:[#allocation2 + $0xc8] sm:$0xff] %v343
  %448 = vst [vmem:[#allocation2 + $0xd0] sm:$0xff] %v414
  %449 = vst [vmem:[#allocation2 + $0xd8] sm:$0xff] %v416
  %450 = vst [vmem:[#allocation2 + $0xe0] sm:$0xff] %v345
  %451 = vst [vmem:[#allocation2 + $0xe8] sm:$0xff] %v347
  %452 = vst [vmem:[#allocation2 + $0xf0] sm:$0xff] %v418
  %453 = vst [vmem:[#allocation2 + $0xf8] sm:$0xff] %v420
  %v454 = vld [vmem:[#allocation3] sm:$0xff]
  %v455 = vld [vmem:[#allocation4] sm:$0xff]
  %v456 = vld [vmem:[#allocation2] sm:$0xff]
  %v457 = vld [vmem:[#allocation2 + $0x8] sm:$0xff]
  %v458 = vld [vmem:[#allocation2 + $0x10] sm:$0xff]
  %v459 = vld [vmem:[#allocation2 + $0x18] sm:$0xff]
  %v460 = vpack.c.bf16 %v454, %v454
  %v461 = vld [vmem:[%s2] sm:$0xff]
  %v462 = vld [vmem:[%s2 + $0x8] sm:$0xff]
  %v463 = vld [vmem:[%s2 + $0x10] sm:$0xff]
  %v464 = vld [vmem:[%s2 + $0x18] sm:$0xff]
  %v465 = vld [vmem:[%s2 + $0x20] sm:$0xff]
  %v466 = vld [vmem:[%s2 + $0x28] sm:$0xff]
  %v467 = vld [vmem:[%s2 + $0x30] sm:$0xff]
  %v468 = vld [vmem:[%s2 + $0x38] sm:$0xff]
  %v469 = vld [vmem:[%s2 + $0x40] sm:$0xff]
  %v470 = vld [vmem:[%s2 + $0x48] sm:$0xff]
  %v471 = vld [vmem:[%s2 + $0x50] sm:$0xff]
  %v472 = vld [vmem:[%s2 + $0x58] sm:$0xff]
  %v473 = vld [vmem:[%s2 + $0x60] sm:$0xff]
  %v474 = vld [vmem:[%s2 + $0x68] sm:$0xff]
  %v475 = vld [vmem:[%s2 + $0x70] sm:$0xff]
  %v476 = vld [vmem:[%s2 + $0x78] sm:$0xff]
  %v477 = vld [vmem:[%s2 + $0x80] sm:$0xff]
  %v478 = vld [vmem:[%s2 + $0x88] sm:$0xff]
  %v479 = vld [vmem:[%s2 + $0x90] sm:$0xff]
  %v480 = vld [vmem:[%s2 + $0x98] sm:$0xff]
  %v481 = vld [vmem:[%s2 + $0xa0] sm:$0xff]
  %v482 = vld [vmem:[%s2 + $0xa8] sm:$0xff]
  %v483 = vld [vmem:[%s2 + $0xb0] sm:$0xff]
  %v484 = vld [vmem:[%s2 + $0xb8] sm:$0xff]
  %v485 = vld [vmem:[%s2 + $0xc0] sm:$0xff]
  %v486 = vld [vmem:[%s2 + $0xc8] sm:$0xff]
  %v487 = vld [vmem:[%s2 + $0xd0] sm:$0xff]
  %v488 = vld [vmem:[%s2 + $0xd8] sm:$0xff]
  %v489 = vld [vmem:[%s2 + $0xe0] sm:$0xff]
  %v490 = vld [vmem:[%s2 + $0xe8] sm:$0xff]
  %v491 = vld [vmem:[%s2 + $0xf0] sm:$0xff]
  %v492 = vld [vmem:[%s2 + $0xf8] sm:$0xff]
  %v525 = vunpack.c.l.b16 %v461
  %v526 = vunpack.c.h.b16 %v461
  %v527 = vunpack.c.l.b16 %v462
  %v528 = vunpack.c.h.b16 %v462
  %v529 = vunpack.c.l.b16 %v463
  %v530 = vunpack.c.h.b16 %v463
  %v531 = vunpack.c.l.b16 %v464
  %v532 = vunpack.c.h.b16 %v464
  %v533 = vunpack.c.l.b16 %v465
  %v534 = vunpack.c.h.b16 %v465
  %v535 = vunpack.c.l.b16 %v466
  %v536 = vunpack.c.h.b16 %v466
  %v537 = vunpack.c.l.b16 %v467
  %v538 = vunpack.c.h.b16 %v467
  %v539 = vunpack.c.l.b16 %v468
  %v540 = vunpack.c.h.b16 %v468
  %v541 = vunpack.c.l.b16 %v469
  %v542 = vunpack.c.h.b16 %v469
  %v543 = vunpack.c.l.b16 %v470
  %v544 = vunpack.c.h.b16 %v470
  %v545 = vunpack.c.l.b16 %v471
  %v546 = vunpack.c.h.b16 %v471
  %v547 = vunpack.c.l.b16 %v472
  %v548 = vunpack.c.h.b16 %v472
  %v549 = vunpack.c.l.b16 %v473
  %v550 = vunpack.c.h.b16 %v473
  %v551 = vunpack.c.l.b16 %v474
  %v552 = vunpack.c.h.b16 %v474
  %v553 = vunpack.c.l.b16 %v475
  %v554 = vunpack.c.h.b16 %v475
  %v555 = vunpack.c.l.b16 %v476
  %v556 = vunpack.c.h.b16 %v476
  %v557 = vunpack.c.l.b16 %v477
  %v558 = vunpack.c.h.b16 %v477
  %v559 = vunpack.c.l.b16 %v478
  %v560 = vunpack.c.h.b16 %v478
  %v561 = vunpack.c.l.b16 %v479
  %v562 = vunpack.c.h.b16 %v479
  %v563 = vunpack.c.l.b16 %v480
  %v564 = vunpack.c.h.b16 %v480
  %v565 = vunpack.c.l.b16 %v481
  %v566 = vunpack.c.h.b16 %v481
  %v567 = vunpack.c.l.b16 %v482
  %v568 = vunpack.c.h.b16 %v482
  %v569 = vunpack.c.l.b16 %v483
  %v570 = vunpack.c.h.b16 %v483
  %v571 = vunpack.c.l.b16 %v484
  %v572 = vunpack.c.h.b16 %v484
  %v573 = vunpack.c.l.b16 %v485
  %v574 = vunpack.c.h.b16 %v485
  %v575 = vunpack.c.l.b16 %v486
  %v576 = vunpack.c.h.b16 %v486
  %v577 = vunpack.c.l.b16 %v487
  %v578 = vunpack.c.h.b16 %v487
  %v579 = vunpack.c.l.b16 %v488
  %v580 = vunpack.c.h.b16 %v488
  %v581 = vunpack.c.l.b16 %v489
  %v582 = vunpack.c.h.b16 %v489
  %v583 = vunpack.c.l.b16 %v490
  %v584 = vunpack.c.h.b16 %v490
  %v585 = vunpack.c.l.b16 %v491
  %v586 = vunpack.c.h.b16 %v491
  %v587 = vunpack.c.l.b16 %v492
  %v588 = vunpack.c.h.b16 %v492
  %v589 = vpack.c.b16 %v529, %v525
  %v590 = vpack.c.b16 %v530, %v526
  %v591 = vpack.c.b16 %v531, %v527
  %v592 = vpack.c.b16 %v532, %v528
  %v593 = vpack.c.b16 %v537, %v533
  %v594 = vpack.c.b16 %v538, %v534
  %v595 = vpack.c.b16 %v539, %v535
  %v596 = vpack.c.b16 %v540, %v536
  %v597 = vpack.c.b16 %v545, %v541
  %v598 = vpack.c.b16 %v546, %v542
  %v599 = vpack.c.b16 %v547, %v543
  %v600 = vpack.c.b16 %v548, %v544
  %v601 = vpack.c.b16 %v553, %v549
  %v602 = vpack.c.b16 %v554, %v550
  %v603 = vpack.c.b16 %v555, %v551
  %v604 = vpack.c.b16 %v556, %v552
  %v605 = vpack.c.b16 %v561, %v557
  %v606 = vpack.c.b16 %v562, %v558
  %v607 = vpack.c.b16 %v563, %v559
  %v608 = vpack.c.b16 %v564, %v560
  %v609 = vpack.c.b16 %v569, %v565
  %v610 = vpack.c.b16 %v570, %v566
  %v611 = vpack.c.b16 %v571, %v567
  %v612 = vpack.c.b16 %v572, %v568
  %v613 = vpack.c.b16 %v577, %v573
  %v614 = vpack.c.b16 %v578, %v574
  %v615 = vpack.c.b16 %v579, %v575
  %v616 = vpack.c.b16 %v580, %v576
  %v617 = vpack.c.b16 %v585, %v581
  %v618 = vpack.c.b16 %v586, %v582
  %v619 = vpack.c.b16 %v587, %v583
  %v620 = vpack.c.b16 %v588, %v584
  %653 = vmatprep.subr.bf16.mxu0 %v618
  %654 = vmatpush1.bf16.msra.mxu0 %v617
  %655 = vmatprep.subr.bf16.mxu0 %v614
  %656 = vmatpush1.bf16.msra.mxu0 %v613
  %657 = vmatprep.subr.bf16.mxu0 %v610
  %658 = vmatpush1.bf16.msra.mxu0 %v609
  %659 = vmatprep.subr.bf16.mxu0 %v606
  %660 = vmatpush1.bf16.msra.mxu0 %v605
  %661 = vmatprep.subr.bf16.mxu0 %v602
  %662 = vmatpush1.bf16.msra.mxu0 %v601
  %663 = vmatprep.subr.bf16.mxu0 %v598
  %664 = vmatpush1.bf16.msra.mxu0 %v597
  %665 = vmatprep.subr.bf16.mxu0 %v594
  %666 = vmatpush1.bf16.msra.mxu0 %v593
  %667 = vmatprep.subr.bf16.mxu0 %v590
  %668 = vmatpush1.bf16.msra.mxu0 %v589
  %669 = vmatprep.subr.bf16.mxu0 0
  %670 = vmatpush2.bf16.msra.mxu0 0
  %671 = vmatprep.subr.bf16.mxu0 0
  %672 = vmatpush2.bf16.msra.mxu0 0
  %673 = vmatprep.subr.bf16.mxu0 0
  %674 = vmatpush2.bf16.msra.mxu0 0
  %675 = vmatprep.subr.bf16.mxu0 0
  %676 = vmatpush2.bf16.msra.mxu0 0
  %677 = vmatprep.subr.bf16.mxu0 0
  %678 = vmatpush2.bf16.msra.mxu0 0
  %679 = vmatprep.subr.bf16.mxu0 0
  %680 = vmatpush2.bf16.msra.mxu0 0
  %681 = vmatprep.subr.bf16.mxu0 0
  %682 = vmatpush2.bf16.msra.mxu0 0
  %683 = vmatprep.subr.bf16.mxu0 0
  %684 = vmatpush2.bf16.msra.mxu0 0
  %685 = vmatprep.mubr.bf16.mxu0 0
  %686 = vmatmul.mubr.bf16.gmra.mxu0 %v460
  %v687 = vpop.f32.mrf.mxu0
  %v688 = vadd.f32 0.0, %v687
  %v689 = vpop.f32.mrf.mxu0
  %v690 = vadd.f32 0.0, %v689
  %v691 = vpop.f32.mrf.mxu0
  %v692 = vpop.f32.mrf.mxu0
  %693 = vdwg.mxu0
  %694 = vmatprep.subr.bf16.mxu0 %v620
  %695 = vmatpush1.bf16.msra.mxu0 %v619
  %696 = vmatprep.subr.bf16.mxu0 %v616
  %697 = vmatpush1.bf16.msra.mxu0 %v615
  %698 = vmatprep.subr.bf16.mxu0 %v612
  %699 = vmatpush1.bf16.msra.mxu0 %v611
  %700 = vmatprep.subr.bf16.mxu0 %v608
  %701 = vmatpush1.bf16.msra.mxu0 %v607
  %702 = vmatprep.subr.bf16.mxu0 %v604
  %703 = vmatpush1.bf16.msra.mxu0 %v603
  %704 = vmatprep.subr.bf16.mxu0 %v600
  %705 = vmatpush1.bf16.msra.mxu0 %v599
  %706 = vmatprep.subr.bf16.mxu0 %v596
  %707 = vmatpush1.bf16.msra.mxu0 %v595
  %708 = vmatprep.subr.bf16.mxu0 %v592
  %709 = vmatpush1.bf16.msra.mxu0 %v591
  %710 = vmatprep.subr.bf16.mxu0 0
  %711 = vmatpush2.bf16.msra.mxu0 0
  %712 = vmatprep.subr.bf16.mxu0 0
  %713 = vmatpush2.bf16.msra.mxu0 0
  %714 = vmatprep.subr.bf16.mxu0 0
  %715 = vmatpush2.bf16.msra.mxu0 0
  %716 = vmatprep.subr.bf16.mxu0 0
  %717 = vmatpush2.bf16.msra.mxu0 0
  %718 = vmatprep.subr.bf16.mxu0 0
  %719 = vmatpush2.bf16.msra.mxu0 0
  %720 = vmatprep.subr.bf16.mxu0 0
  %721 = vmatpush2.bf16.msra.mxu0 0
  %722 = vmatprep.subr.bf16.mxu0 0
  %723 = vmatpush2.bf16.msra.mxu0 0
  %724 = vmatprep.subr.bf16.mxu0 0
  %725 = vmatpush2.bf16.msra.mxu0 0
  %726 = vmatprep.mubr.bf16.mxu0 0
  %727 = vmatmul.mubr.bf16.gmra.mxu0 %v460
  %v728 = vpop.f32.mrf.mxu0
  %v729 = vadd.f32 0.0, %v728
  %v730 = vpop.f32.mrf.mxu0
  %v731 = vadd.f32 0.0, %v730
  %v732 = vpop.f32.mrf.mxu0
  %v733 = vpop.f32.mrf.mxu0
  %734 = vdwg.mxu0
  %v735 = vadd.f32 %v456, %v688
  %v736 = vadd.f32 %v457, %v690
  %v737 = vadd.f32 %v458, %v729
  %v738 = vadd.f32 %v459, %v731
  %v739 = vmul.f32 %v735, 0.5
  %v740 = vtanh.pop %v739
  %v741 = vmul.f32 %v740, 0.5
  %v742 = vadd.f32 %v741, 0.5
  %v743 = vmul.f32 %v736, 0.5
  %v744 = vtanh.pop %v743
  %v745 = vmul.f32 %v744, 0.5
  %v746 = vadd.f32 %v745, 0.5
  %v747 = vtanh.pop %v737
  %v748 = vmul.f32 %v738, 0.5
  %v749 = vtanh.pop %v748
  %v750 = vmul.f32 %v749, 0.5
  %v751 = vadd.f32 %v750, 0.5
  %v752 = vmul.f32 %v746, %v455
  %v753 = vmul.f32 %v742, %v747
  %v754 = vadd.f32 %v752, %v753
  %v755 = vtanh.pop %v754
  %v756 = vmul.f32 %v751, %v755
  %s757 = scalar_lea.vmem [#allocation2], 32
  %v758 = vld [vmem:[%s757] sm:$0xff]
  %v759 = vld [vmem:[%s757 + $0x8] sm:$0xff]
  %v760 = vld [vmem:[%s757 + $0x10] sm:$0xff]
  %v761 = vld [vmem:[%s757 + $0x18] sm:$0xff]
  %v762 = vpack.c.bf16 %v756, %v756
  %763 = vmatprep.subr.bf16.mxu0 %v618
  %764 = vmatpush1.bf16.msra.mxu0 %v617
  %765 = vmatprep.subr.bf16.mxu0 %v614
  %766 = vmatpush1.bf16.msra.mxu0 %v613
  %767 = vmatprep.subr.bf16.mxu0 %v610
  %768 = vmatpush1.bf16.msra.mxu0 %v609
  %769 = vmatprep.subr.bf16.mxu0 %v606
  %770 = vmatpush1.bf16.msra.mxu0 %v605
  %771 = vmatprep.subr.bf16.mxu0 %v602
  %772 = vmatpush1.bf16.msra.mxu0 %v601
  %773 = vmatprep.subr.bf16.mxu0 %v598
  %774 = vmatpush1.bf16.msra.mxu0 %v597
  %775 = vmatprep.subr.bf16.mxu0 %v594
  %776 = vmatpush1.bf16.msra.mxu0 %v593
  %777 = vmatprep.subr.bf16.mxu0 %v590
  %778 = vmatpush1.bf16.msra.mxu0 %v589
  %779 = vmatprep.subr.bf16.mxu0 0
  %780 = vmatpush2.bf16.msra.mxu0 0
  %781 = vmatprep.subr.bf16.mxu0 0
  %782 = vmatpush2.bf16.msra.mxu0 0
  %783 = vmatprep.subr.bf16.mxu0 0
  %784 = vmatpush2.bf16.msra.mxu0 0
  %785 = vmatprep.subr.bf16.mxu0 0
  %786 = vmatpush2.bf16.msra.mxu0 0
  %787 = vmatprep.subr.bf16.mxu0 0
  %788 = vmatpush2.bf16.msra.mxu0 0
  %789 = vmatprep.subr.bf16.mxu0 0
  %790 = vmatpush2.bf16.msra.mxu0 0
  %791 = vmatprep.subr.bf16.mxu0 0
  %792 = vmatpush2.bf16.msra.mxu0 0
  %793 = vmatprep.subr.bf16.mxu0 0
  %794 = vmatpush2.bf16.msra.mxu0 0
  %795 = vmatprep.mubr.bf16.mxu0 0
  %796 = vmatmul.mubr.bf16.gmra.mxu0 %v762
  %v797 = vpop.f32.mrf.mxu0
  %v798 = vadd.f32 0.0, %v797
  %v799 = vpop.f32.mrf.mxu0
  %v800 = vadd.f32 0.0, %v799
  %v801 = vpop.f32.mrf.mxu0
  %v802 = vpop.f32.mrf.mxu0
  %803 = vdwg.mxu0
  %804 = vmatprep.subr.bf16.mxu0 %v620
  %805 = vmatpush1.bf16.msra.mxu0 %v619
  %806 = vmatprep.subr.bf16.mxu0 %v616
  %807 = vmatpush1.bf16.msra.mxu0 %v615
  %808 = vmatprep.subr.bf16.mxu0 %v612
  %809 = vmatpush1.bf16.msra.mxu0 %v611
  %810 = vmatprep.subr.bf16.mxu0 %v608
  %811 = vmatpush1.bf16.msra.mxu0 %v607
  %812 = vmatprep.subr.bf16.mxu0 %v604
  %813 = vmatpush1.bf16.msra.mxu0 %v603
  %814 = vmatprep.subr.bf16.mxu0 %v600
  %815 = vmatpush1.bf16.msra.mxu0 %v599
  %816 = vmatprep.subr.bf16.mxu0 %v596
  %817 = vmatpush1.bf16.msra.mxu0 %v595
  %818 = vmatprep.subr.bf16.mxu0 %v592
  %819 = vmatpush1.bf16.msra.mxu0 %v591
  %820 = vmatprep.subr.bf16.mxu0 0
  %821 = vmatpush2.bf16.msra.mxu0 0
  %822 = vmatprep.subr.bf16.mxu0 0
  %823 = vmatpush2.bf16.msra.mxu0 0
  %824 = vmatprep.subr.bf16.mxu0 0
  %825 = vmatpush2.bf16.msra.mxu0 0
  %826 = vmatprep.subr.bf16.mxu0 0
  %827 = vmatpush2.bf16.msra.mxu0 0
  %828 = vmatprep.subr.bf16.mxu0 0
  %829 = vmatpush2.bf16.msra.mxu0 0
  %830 = vmatprep.subr.bf16.mxu0 0
  %831 = vmatpush2.bf16.msra.mxu0 0
  %832 = vmatprep.subr.bf16.mxu0 0
  %833 = vmatpush2.bf16.msra.mxu0 0
  %834 = vmatprep.subr.bf16.mxu0 0
  %835 = vmatpush2.bf16.msra.mxu0 0
  %836 = vmatprep.mubr.bf16.mxu0 0
  %837 = vmatmul.mubr.bf16.gmra.mxu0 %v762
  %v838 = vpop.f32.mrf.mxu0
  %v839 = vadd.f32 0.0, %v838
  %v840 = vpop.f32.mrf.mxu0
  %v841 = vadd.f32 0.0, %v840
  %v842 = vpop.f32.mrf.mxu0
  %v843 = vpop.f32.mrf.mxu0
  %844 = vdwg.mxu0
  %v845 = vadd.f32 %v758, %v798
  %v846 = vadd.f32 %v759, %v800
  %v847 = vadd.f32 %v760, %v839
  %v848 = vadd.f32 %v761, %v841
  %v849 = vmul.f32 %v845, 0.5
  %v850 = vtanh.pop %v849
  %v851 = vmul.f32 %v850, 0.5
  %v852 = vadd.f32 %v851, 0.5
  %v853 = vmul.f32 %v846, 0.5
  %v854 = vtanh.pop %v853
  %v855 = vmul.f32 %v854, 0.5
  %v856 = vadd.f32 %v855, 0.5
  %v857 = vtanh.pop %v847
  %v858 = vmul.f32 %v848, 0.5
  %v859 = vtanh.pop %v858
  %v860 = vmul.f32 %v859, 0.5
  %v861 = vadd.f32 %v860, 0.5
  %v862 = vmul.f32 %v856, %v754
  %v863 = vmul.f32 %v852, %v857
  %v864 = vadd.f32 %v862, %v863
  %v865 = vtanh.pop %v864
  %v866 = vmul.f32 %v861, %v865
  %s867 = scalar_lea.vmem [#allocation2], 64
  %v868 = vld [vmem:[%s867] sm:$0xff]
  %v869 = vld [vmem:[%s867 + $0x8] sm:$0xff]
  %v870 = vld [vmem:[%s867 + $0x10] sm:$0xff]
  %v871 = vld [vmem:[%s867 + $0x18] sm:$0xff]
  %v872 = vpack.c.bf16 %v866, %v866
  %873 = vmatprep.subr.bf16.mxu0 %v618
  %874 = vmatpush1.bf16.msra.mxu0 %v617
  %875 = vmatprep.subr.bf16.mxu0 %v614
  %876 = vmatpush1.bf16.msra.mxu0 %v613
  %877 = vmatprep.subr.bf16.mxu0 %v610
  %878 = vmatpush1.bf16.msra.mxu0 %v609
  %879 = vmatprep.subr.bf16.mxu0 %v606
  %880 = vmatpush1.bf16.msra.mxu0 %v605
  %881 = vmatprep.subr.bf16.mxu0 %v602
  %882 = vmatpush1.bf16.msra.mxu0 %v601
  %883 = vmatprep.subr.bf16.mxu0 %v598
  %884 = vmatpush1.bf16.msra.mxu0 %v597
  %885 = vmatprep.subr.bf16.mxu0 %v594
  %886 = vmatpush1.bf16.msra.mxu0 %v593
  %887 = vmatprep.subr.bf16.mxu0 %v590
  %888 = vmatpush1.bf16.msra.mxu0 %v589
  %889 = vmatprep.subr.bf16.mxu0 0
  %890 = vmatpush2.bf16.msra.mxu0 0
  %891 = vmatprep.subr.bf16.mxu0 0
  %892 = vmatpush2.bf16.msra.mxu0 0
  %893 = vmatprep.subr.bf16.mxu0 0
  %894 = vmatpush2.bf16.msra.mxu0 0
  %895 = vmatprep.subr.bf16.mxu0 0
  %896 = vmatpush2.bf16.msra.mxu0 0
  %897 = vmatprep.subr.bf16.mxu0 0
  %898 = vmatpush2.bf16.msra.mxu0 0
  %899 = vmatprep.subr.bf16.mxu0 0
  %900 = vmatpush2.bf16.msra.mxu0 0
  %901 = vmatprep.subr.bf16.mxu0 0
  %902 = vmatpush2.bf16.msra.mxu0 0
  %903 = vmatprep.subr.bf16.mxu0 0
  %904 = vmatpush2.bf16.msra.mxu0 0
  %905 = vmatprep.mubr.bf16.mxu0 0
  %906 = vmatmul.mubr.bf16.gmra.mxu0 %v872
  %v907 = vpop.f32.mrf.mxu0
  %v908 = vadd.f32 0.0, %v907
  %v909 = vpop.f32.mrf.mxu0
  %v910 = vadd.f32 0.0, %v909
  %v911 = vpop.f32.mrf.mxu0
  %v912 = vpop.f32.mrf.mxu0
  %913 = vdwg.mxu0
  %914 = vmatprep.subr.bf16.mxu0 %v620
  %915 = vmatpush1.bf16.msra.mxu0 %v619
  %916 = vmatprep.subr.bf16.mxu0 %v616
  %917 = vmatpush1.bf16.msra.mxu0 %v615
  %918 = vmatprep.subr.bf16.mxu0 %v612
  %919 = vmatpush1.bf16.msra.mxu0 %v611
  %920 = vmatprep.subr.bf16.mxu0 %v608
  %921 = vmatpush1.bf16.msra.mxu0 %v607
  %922 = vmatprep.subr.bf16.mxu0 %v604
  %923 = vmatpush1.bf16.msra.mxu0 %v603
  %924 = vmatprep.subr.bf16.mxu0 %v600
  %925 = vmatpush1.bf16.msra.mxu0 %v599
  %926 = vmatprep.subr.bf16.mxu0 %v596
  %927 = vmatpush1.bf16.msra.mxu0 %v595
  %928 = vmatprep.subr.bf16.mxu0 %v592
  %929 = vmatpush1.bf16.msra.mxu0 %v591
  %930 = vmatprep.subr.bf16.mxu0 0
  %931 = vmatpush2.bf16.msra.mxu0 0
  %932 = vmatprep.subr.bf16.mxu0 0
  %933 = vmatpush2.bf16.msra.mxu0 0
  %934 = vmatprep.subr.bf16.mxu0 0
  %935 = vmatpush2.bf16.msra.mxu0 0
  %936 = vmatprep.subr.bf16.mxu0 0
  %937 = vmatpush2.bf16.msra.mxu0 0
  %938 = vmatprep.subr.bf16.mxu0 0
  %939 = vmatpush2.bf16.msra.mxu0 0
  %940 = vmatprep.subr.bf16.mxu0 0
  %941 = vmatpush2.bf16.msra.mxu0 0
  %942 = vmatprep.subr.bf16.mxu0 0
  %943 = vmatpush2.bf16.msra.mxu0 0
  %944 = vmatprep.subr.bf16.mxu0 0
  %945 = vmatpush2.bf16.msra.mxu0 0
  %946 = vmatprep.mubr.bf16.mxu0 0
  %947 = vmatmul.mubr.bf16.gmra.mxu0 %v872
  %v948 = vpop.f32.mrf.mxu0
  %v949 = vadd.f32 0.0, %v948
  %v950 = vpop.f32.mrf.mxu0
  %v951 = vadd.f32 0.0, %v950
  %v952 = vpop.f32.mrf.mxu0
  %v953 = vpop.f32.mrf.mxu0
  %954 = vdwg.mxu0
  %v955 = vadd.f32 %v868, %v908
  %v956 = vadd.f32 %v869, %v910
  %v957 = vadd.f32 %v870, %v949
  %v958 = vadd.f32 %v871, %v951
  %v959 = vmul.f32 %v955, 0.5
  %v960 = vtanh.pop %v959
  %v961 = vmul.f32 %v960, 0.5
  %v962 = vadd.f32 %v961, 0.5
  %v963 = vmul.f32 %v956, 0.5
  %v964 = vtanh.pop %v963
  %v965 = vmul.f32 %v964, 0.5
  %v966 = vadd.f32 %v965, 0.5
  %v967 = vtanh.pop %v957
  %v968 = vmul.f32 %v958, 0.5
  %v969 = vtanh.pop %v968
  %v970 = vmul.f32 %v969, 0.5
  %v971 = vadd.f32 %v970, 0.5
  %v972 = vmul.f32 %v966, %v864
  %v973 = vmul.f32 %v962, %v967
  %v974 = vadd.f32 %v972, %v973
  %v975 = vtanh.pop %v974
  %v976 = vmul.f32 %v971, %v975
  %s977 = scalar_lea.vmem [#allocation2], 96
  %v978 = vld [vmem:[%s977] sm:$0xff]
  %v979 = vld [vmem:[%s977 + $0x8] sm:$0xff]
  %v980 = vld [vmem:[%s977 + $0x10] sm:$0xff]
  %v981 = vld [vmem:[%s977 + $0x18] sm:$0xff]
  %v982 = vpack.c.bf16 %v976, %v976
  %983 = vmatprep.subr.bf16.mxu0 %v618
  %984 = vmatpush1.bf16.msra.mxu0 %v617
  %985 = vmatprep.subr.bf16.mxu0 %v614
  %986 = vmatpush1.bf16.msra.mxu0 %v613
  %987 = vmatprep.subr.bf16.mxu0 %v610
  %988 = vmatpush1.bf16.msra.mxu0 %v609
  %989 = vmatprep.subr.bf16.mxu0 %v606
  %990 = vmatpush1.bf16.msra.mxu0 %v605
  %991 = vmatprep.subr.bf16.mxu0 %v602
  %992 = vmatpush1.bf16.msra.mxu0 %v601
  %993 = vmatprep.subr.bf16.mxu0 %v598
  %994 = vmatpush1.bf16.msra.mxu0 %v597
  %995 = vmatprep.subr.bf16.mxu0 %v594
  %996 = vmatpush1.bf16.msra.mxu0 %v593
  %997 = vmatprep.subr.bf16.mxu0 %v590
  %998 = vmatpush1.bf16.msra.mxu0 %v589
  %999 = vmatprep.subr.bf16.mxu0 0
  %1000 = vmatpush2.bf16.msra.mxu0 0
  %1001 = vmatprep.subr.bf16.mxu0 0
  %1002 = vmatpush2.bf16.msra.mxu0 0
  %1003 = vmatprep.subr.bf16.mxu0 0
  %1004 = vmatpush2.bf16.msra.mxu0 0
  %1005 = vmatprep.subr.bf16.mxu0 0
  %1006 = vmatpush2.bf16.msra.mxu0 0
  %1007 = vmatprep.subr.bf16.mxu0 0
  %1008 = vmatpush2.bf16.msra.mxu0 0
  %1009 = vmatprep.subr.bf16.mxu0 0
  %1010 = vmatpush2.bf16.msra.mxu0 0
  %1011 = vmatprep.subr.bf16.mxu0 0
  %1012 = vmatpush2.bf16.msra.mxu0 0
  %1013 = vmatprep.subr.bf16.mxu0 0
  %1014 = vmatpush2.bf16.msra.mxu0 0
  %1015 = vmatprep.mubr.bf16.mxu0 0
  %1016 = vmatmul.mubr.bf16.gmra.mxu0 %v982
  %v1017 = vpop.f32.mrf.mxu0
  %v1018 = vadd.f32 0.0, %v1017
  %v1019 = vpop.f32.mrf.mxu0
  %v1020 = vadd.f32 0.0, %v1019
  %v1021 = vpop.f32.mrf.mxu0
  %v1022 = vpop.f32.mrf.mxu0
  %1023 = vdwg.mxu0
  %1024 = vmatprep.subr.bf16.mxu0 %v620
  %1025 = vmatpush1.bf16.msra.mxu0 %v619
  %1026 = vmatprep.subr.bf16.mxu0 %v616
  %1027 = vmatpush1.bf16.msra.mxu0 %v615
  %1028 = vmatprep.subr.bf16.mxu0 %v612
  %1029 = vmatpush1.bf16.msra.mxu0 %v611
  %1030 = vmatprep.subr.bf16.mxu0 %v608
  %1031 = vmatpush1.bf16.msra.mxu0 %v607
  %1032 = vmatprep.subr.bf16.mxu0 %v604
  %1033 = vmatpush1.bf16.msra.mxu0 %v603
  %1034 = vmatprep.subr.bf16.mxu0 %v600
  %1035 = vmatpush1.bf16.msra.mxu0 %v599
  %1036 = vmatprep.subr.bf16.mxu0 %v596
  %1037 = vmatpush1.bf16.msra.mxu0 %v595
  %1038 = vmatprep.subr.bf16.mxu0 %v592
  %1039 = vmatpush1.bf16.msra.mxu0 %v591
  %1040 = vmatprep.subr.bf16.mxu0 0
  %1041 = vmatpush2.bf16.msra.mxu0 0
  %1042 = vmatprep.subr.bf16.mxu0 0
  %1043 = vmatpush2.bf16.msra.mxu0 0
  %1044 = vmatprep.subr.bf16.mxu0 0
  %1045 = vmatpush2.bf16.msra.mxu0 0
  %1046 = vmatprep.subr.bf16.mxu0 0
  %1047 = vmatpush2.bf16.msra.mxu0 0
  %1048 = vmatprep.subr.bf16.mxu0 0
  %1049 = vmatpush2.bf16.msra.mxu0 0
  %1050 = vmatprep.subr.bf16.mxu0 0
  %1051 = vmatpush2.bf16.msra.mxu0 0
  %1052 = vmatprep.subr.bf16.mxu0 0
  %1053 = vmatpush2.bf16.msra.mxu0 0
  %1054 = vmatprep.subr.bf16.mxu0 0
  %1055 = vmatpush2.bf16.msra.mxu0 0
  %1056 = vmatprep.mubr.bf16.mxu0 0
  %1057 = vmatmul.mubr.bf16.gmra.mxu0 %v982
  %v1058 = vpop.f32.mrf.mxu0
  %v1059 = vadd.f32 0.0, %v1058
  %v1060 = vpop.f32.mrf.mxu0
  %v1061 = vadd.f32 0.0, %v1060
  %v1062 = vpop.f32.mrf.mxu0
  %v1063 = vpop.f32.mrf.mxu0
  %1064 = vdwg.mxu0
  %v1065 = vadd.f32 %v978, %v1018
  %v1066 = vadd.f32 %v979, %v1020
  %v1067 = vadd.f32 %v980, %v1059
  %v1068 = vadd.f32 %v981, %v1061
  %v1069 = vmul.f32 %v1065, 0.5
  %v1070 = vtanh.pop %v1069
  %v1071 = vmul.f32 %v1070, 0.5
  %v1072 = vadd.f32 %v1071, 0.5
  %v1073 = vmul.f32 %v1066, 0.5
  %v1074 = vtanh.pop %v1073
  %v1075 = vmul.f32 %v1074, 0.5
  %v1076 = vadd.f32 %v1075, 0.5
  %v1077 = vtanh.pop %v1067
  %v1078 = vmul.f32 %v1068, 0.5
  %v1079 = vtanh.pop %v1078
  %v1080 = vmul.f32 %v1079, 0.5
  %v1081 = vadd.f32 %v1080, 0.5
  %v1082 = vmul.f32 %v1076, %v974
  %v1083 = vmul.f32 %v1072, %v1077
  %v1084 = vadd.f32 %v1082, %v1083
  %v1085 = vtanh.pop %v1084
  %v1086 = vmul.f32 %v1081, %v1085
  %s1087 = scalar_lea.vmem [#allocation2], 128
  %v1088 = vld [vmem:[%s1087] sm:$0xff]
  %v1089 = vld [vmem:[%s1087 + $0x8] sm:$0xff]
  %v1090 = vld [vmem:[%s1087 + $0x10] sm:$0xff]
  %v1091 = vld [vmem:[%s1087 + $0x18] sm:$0xff]
  %v1092 = vpack.c.bf16 %v1086, %v1086
  %1093 = vmatprep.subr.bf16.mxu0 %v618
  %1094 = vmatpush1.bf16.msra.mxu0 %v617
  %1095 = vmatprep.subr.bf16.mxu0 %v614
  %1096 = vmatpush1.bf16.msra.mxu0 %v613
  %1097 = vmatprep.subr.bf16.mxu0 %v610
  %1098 = vmatpush1.bf16.msra.mxu0 %v609
  %1099 = vmatprep.subr.bf16.mxu0 %v606
  %1100 = vmatpush1.bf16.msra.mxu0 %v605
  %1101 = vmatprep.subr.bf16.mxu0 %v602
  %1102 = vmatpush1.bf16.msra.mxu0 %v601
  %1103 = vmatprep.subr.bf16.mxu0 %v598
  %1104 = vmatpush1.bf16.msra.mxu0 %v597
  %1105 = vmatprep.subr.bf16.mxu0 %v594
  %1106 = vmatpush1.bf16.msra.mxu0 %v593
  %1107 = vmatprep.subr.bf16.mxu0 %v590
  %1108 = vmatpush1.bf16.msra.mxu0 %v589
  %1109 = vmatprep.subr.bf16.mxu0 0
  %1110 = vmatpush2.bf16.msra.mxu0 0
  %1111 = vmatprep.subr.bf16.mxu0 0
  %1112 = vmatpush2.bf16.msra.mxu0 0
  %1113 = vmatprep.subr.bf16.mxu0 0
  %1114 = vmatpush2.bf16.msra.mxu0 0
  %1115 = vmatprep.subr.bf16.mxu0 0
  %1116 = vmatpush2.bf16.msra.mxu0 0
  %1117 = vmatprep.subr.bf16.mxu0 0
  %1118 = vmatpush2.bf16.msra.mxu0 0
  %1119 = vmatprep.subr.bf16.mxu0 0
  %1120 = vmatpush2.bf16.msra.mxu0 0
  %1121 = vmatprep.subr.bf16.mxu0 0
  %1122 = vmatpush2.bf16.msra.mxu0 0
  %1123 = vmatprep.subr.bf16.mxu0 0
  %1124 = vmatpush2.bf16.msra.mxu0 0
  %1125 = vmatprep.mubr.bf16.mxu0 0
  %1126 = vmatmul.mubr.bf16.gmra.mxu0 %v1092
  %v1127 = vpop.f32.mrf.mxu0
  %v1128 = vadd.f32 0.0, %v1127
  %v1129 = vpop.f32.mrf.mxu0
  %v1130 = vadd.f32 0.0, %v1129
  %v1131 = vpop.f32.mrf.mxu0
  %v1132 = vpop.f32.mrf.mxu0
  %1133 = vdwg.mxu0
  %1134 = vmatprep.subr.bf16.mxu0 %v620
  %1135 = vmatpush1.bf16.msra.mxu0 %v619
  %1136 = vmatprep.subr.bf16.mxu0 %v616
  %1137 = vmatpush1.bf16.msra.mxu0 %v615
  %1138 = vmatprep.subr.bf16.mxu0 %v612
  %1139 = vmatpush1.bf16.msra.mxu0 %v611
  %1140 = vmatprep.subr.bf16.mxu0 %v608
  %1141 = vmatpush1.bf16.msra.mxu0 %v607
  %1142 = vmatprep.subr.bf16.mxu0 %v604
  %1143 = vmatpush1.bf16.msra.mxu0 %v603
  %1144 = vmatprep.subr.bf16.mxu0 %v600
  %1145 = vmatpush1.bf16.msra.mxu0 %v599
  %1146 = vmatprep.subr.bf16.mxu0 %v596
  %1147 = vmatpush1.bf16.msra.mxu0 %v595
  %1148 = vmatprep.subr.bf16.mxu0 %v592
  %1149 = vmatpush1.bf16.msra.mxu0 %v591
  %1150 = vmatprep.subr.bf16.mxu0 0
  %1151 = vmatpush2.bf16.msra.mxu0 0
  %1152 = vmatprep.subr.bf16.mxu0 0
  %1153 = vmatpush2.bf16.msra.mxu0 0
  %1154 = vmatprep.subr.bf16.mxu0 0
  %1155 = vmatpush2.bf16.msra.mxu0 0
  %1156 = vmatprep.subr.bf16.mxu0 0
  %1157 = vmatpush2.bf16.msra.mxu0 0
  %1158 = vmatprep.subr.bf16.mxu0 0
  %1159 = vmatpush2.bf16.msra.mxu0 0
  %1160 = vmatprep.subr.bf16.mxu0 0
  %1161 = vmatpush2.bf16.msra.mxu0 0
  %1162 = vmatprep.subr.bf16.mxu0 0
  %1163 = vmatpush2.bf16.msra.mxu0 0
  %1164 = vmatprep.subr.bf16.mxu0 0
  %1165 = vmatpush2.bf16.msra.mxu0 0
  %1166 = vmatprep.mubr.bf16.mxu0 0
  %1167 = vmatmul.mubr.bf16.gmra.mxu0 %v1092
  %v1168 = vpop.f32.mrf.mxu0
  %v1169 = vadd.f32 0.0, %v1168
  %v1170 = vpop.f32.mrf.mxu0
  %v1171 = vadd.f32 0.0, %v1170
  %v1172 = vpop.f32.mrf.mxu0
  %v1173 = vpop.f32.mrf.mxu0
  %1174 = vdwg.mxu0
  %v1175 = vadd.f32 %v1088, %v1128
  %v1176 = vadd.f32 %v1089, %v1130
  %v1177 = vadd.f32 %v1090, %v1169
  %v1178 = vadd.f32 %v1091, %v1171
  %v1179 = vmul.f32 %v1175, 0.5
  %v1180 = vtanh.pop %v1179
  %v1181 = vmul.f32 %v1180, 0.5
  %v1182 = vadd.f32 %v1181, 0.5
  %v1183 = vmul.f32 %v1176, 0.5
  %v1184 = vtanh.pop %v1183
  %v1185 = vmul.f32 %v1184, 0.5
  %v1186 = vadd.f32 %v1185, 0.5
  %v1187 = vtanh.pop %v1177
  %v1188 = vmul.f32 %v1178, 0.5
  %v1189 = vtanh.pop %v1188
  %v1190 = vmul.f32 %v1189, 0.5
  %v1191 = vadd.f32 %v1190, 0.5
  %v1192 = vmul.f32 %v1186, %v1084
  %v1193 = vmul.f32 %v1182, %v1187
  %v1194 = vadd.f32 %v1192, %v1193
  %v1195 = vtanh.pop %v1194
  %v1196 = vmul.f32 %v1191, %v1195
  %s1197 = scalar_lea.vmem [#allocation2], 160
  %v1198 = vld [vmem:[%s1197] sm:$0xff]
  %v1199 = vld [vmem:[%s1197 + $0x8] sm:$0xff]
  %v1200 = vld [vmem:[%s1197 + $0x10] sm:$0xff]
  %v1201 = vld [vmem:[%s1197 + $0x18] sm:$0xff]
  %v1202 = vpack.c.bf16 %v1196, %v1196
  %1203 = vmatprep.subr.bf16.mxu0 %v618
  %1204 = vmatpush1.bf16.msra.mxu0 %v617
  %1205 = vmatprep.subr.bf16.mxu0 %v614
  %1206 = vmatpush1.bf16.msra.mxu0 %v613
  %1207 = vmatprep.subr.bf16.mxu0 %v610
  %1208 = vmatpush1.bf16.msra.mxu0 %v609
  %1209 = vmatprep.subr.bf16.mxu0 %v606
  %1210 = vmatpush1.bf16.msra.mxu0 %v605
  %1211 = vmatprep.subr.bf16.mxu0 %v602
  %1212 = vmatpush1.bf16.msra.mxu0 %v601
  %1213 = vmatprep.subr.bf16.mxu0 %v598
  %1214 = vmatpush1.bf16.msra.mxu0 %v597
  %1215 = vmatprep.subr.bf16.mxu0 %v594
  %1216 = vmatpush1.bf16.msra.mxu0 %v593
  %1217 = vmatprep.subr.bf16.mxu0 %v590
  %1218 = vmatpush1.bf16.msra.mxu0 %v589
  %1219 = vmatprep.subr.bf16.mxu0 0
  %1220 = vmatpush2.bf16.msra.mxu0 0
  %1221 = vmatprep.subr.bf16.mxu0 0
  %1222 = vmatpush2.bf16.msra.mxu0 0
  %1223 = vmatprep.subr.bf16.mxu0 0
  %1224 = vmatpush2.bf16.msra.mxu0 0
  %1225 = vmatprep.subr.bf16.mxu0 0
  %1226 = vmatpush2.bf16.msra.mxu0 0
  %1227 = vmatprep.subr.bf16.mxu0 0
  %1228 = vmatpush2.bf16.msra.mxu0 0
  %1229 = vmatprep.subr.bf16.mxu0 0
  %1230 = vmatpush2.bf16.msra.mxu0 0
  %1231 = vmatprep.subr.bf16.mxu0 0
  %1232 = vmatpush2.bf16.msra.mxu0 0
  %1233 = vmatprep.subr.bf16.mxu0 0
  %1234 = vmatpush2.bf16.msra.mxu0 0
  %1235 = vmatprep.mubr.bf16.mxu0 0
  %1236 = vmatmul.mubr.bf16.gmra.mxu0 %v1202
  %v1237 = vpop.f32.mrf.mxu0
  %v1238 = vadd.f32 0.0, %v1237
  %v1239 = vpop.f32.mrf.mxu0
  %v1240 = vadd.f32 0.0, %v1239
  %v1241 = vpop.f32.mrf.mxu0
  %v1242 = vpop.f32.mrf.mxu0
  %1243 = vdwg.mxu0
  %1244 = vmatprep.subr.bf16.mxu0 %v620
  %1245 = vmatpush1.bf16.msra.mxu0 %v619
  %1246 = vmatprep.subr.bf16.mxu0 %v616
  %1247 = vmatpush1.bf16.msra.mxu0 %v615
  %1248 = vmatprep.subr.bf16.mxu0 %v612
  %1249 = vmatpush1.bf16.msra.mxu0 %v611
  %1250 = vmatprep.subr.bf16.mxu0 %v608
  %1251 = vmatpush1.bf16.msra.mxu0 %v607
  %1252 = vmatprep.subr.bf16.mxu0 %v604
  %1253 = vmatpush1.bf16.msra.mxu0 %v603
  %1254 = vmatprep.subr.bf16.mxu0 %v600
  %1255 = vmatpush1.bf16.msra.mxu0 %v599
  %1256 = vmatprep.subr.bf16.mxu0 %v596
  %1257 = vmatpush1.bf16.msra.mxu0 %v595
  %1258 = vmatprep.subr.bf16.mxu0 %v592
  %1259 = vmatpush1.bf16.msra.mxu0 %v591
  %1260 = vmatprep.subr.bf16.mxu0 0
  %1261 = vmatpush2.bf16.msra.mxu0 0
  %1262 = vmatprep.subr.bf16.mxu0 0
  %1263 = vmatpush2.bf16.msra.mxu0 0
  %1264 = vmatprep.subr.bf16.mxu0 0
  %1265 = vmatpush2.bf16.msra.mxu0 0
  %1266 = vmatprep.subr.bf16.mxu0 0
  %1267 = vmatpush2.bf16.msra.mxu0 0
  %1268 = vmatprep.subr.bf16.mxu0 0
  %1269 = vmatpush2.bf16.msra.mxu0 0
  %1270 = vmatprep.subr.bf16.mxu0 0
  %1271 = vmatpush2.bf16.msra.mxu0 0
  %1272 = vmatprep.subr.bf16.mxu0 0
  %1273 = vmatpush2.bf16.msra.mxu0 0
  %1274 = vmatprep.subr.bf16.mxu0 0
  %1275 = vmatpush2.bf16.msra.mxu0 0
  %1276 = vmatprep.mubr.bf16.mxu0 0
  %1277 = vmatmul.mubr.bf16.gmra.mxu0 %v1202
  %v1278 = vpop.f32.mrf.mxu0
  %v1279 = vadd.f32 0.0, %v1278
  %v1280 = vpop.f32.mrf.mxu0
  %v1281 = vadd.f32 0.0, %v1280
  %v1282 = vpop.f32.mrf.mxu0
  %v1283 = vpop.f32.mrf.mxu0
  %1284 = vdwg.mxu0
  %v1285 = vadd.f32 %v1198, %v1238
  %v1286 = vadd.f32 %v1199, %v1240
  %v1287 = vadd.f32 %v1200, %v1279
  %v1288 = vadd.f32 %v1201, %v1281
  %v1289 = vmul.f32 %v1285, 0.5
  %v1290 = vtanh.pop %v1289
  %v1291 = vmul.f32 %v1290, 0.5
  %v1292 = vadd.f32 %v1291, 0.5
  %v1293 = vmul.f32 %v1286, 0.5
  %v1294 = vtanh.pop %v1293
  %v1295 = vmul.f32 %v1294, 0.5
  %v1296 = vadd.f32 %v1295, 0.5
  %v1297 = vtanh.pop %v1287
  %v1298 = vmul.f32 %v1288, 0.5
  %v1299 = vtanh.pop %v1298
  %v1300 = vmul.f32 %v1299, 0.5
  %v1301 = vadd.f32 %v1300, 0.5
  %v1302 = vmul.f32 %v1296, %v1194
  %v1303 = vmul.f32 %v1292, %v1297
  %v1304 = vadd.f32 %v1302, %v1303
  %v1305 = vtanh.pop %v1304
  %v1306 = vmul.f32 %v1301, %v1305
  %s1307 = scalar_lea.vmem [#allocation2], 192
  %v1308 = vld [vmem:[%s1307] sm:$0xff]
  %v1309 = vld [vmem:[%s1307 + $0x8] sm:$0xff]
  %v1310 = vld [vmem:[%s1307 + $0x10] sm:$0xff]
  %v1311 = vld [vmem:[%s1307 + $0x18] sm:$0xff]
  %v1312 = vpack.c.bf16 %v1306, %v1306
  %1313 = vmatprep.subr.bf16.mxu0 %v618
  %1314 = vmatpush1.bf16.msra.mxu0 %v617
  %1315 = vmatprep.subr.bf16.mxu0 %v614
  %1316 = vmatpush1.bf16.msra.mxu0 %v613
  %1317 = vmatprep.subr.bf16.mxu0 %v610
  %1318 = vmatpush1.bf16.msra.mxu0 %v609
  %1319 = vmatprep.subr.bf16.mxu0 %v606
  %1320 = vmatpush1.bf16.msra.mxu0 %v605
  %1321 = vmatprep.subr.bf16.mxu0 %v602
  %1322 = vmatpush1.bf16.msra.mxu0 %v601
  %1323 = vmatprep.subr.bf16.mxu0 %v598
  %1324 = vmatpush1.bf16.msra.mxu0 %v597
  %1325 = vmatprep.subr.bf16.mxu0 %v594
  %1326 = vmatpush1.bf16.msra.mxu0 %v593
  %1327 = vmatprep.subr.bf16.mxu0 %v590
  %1328 = vmatpush1.bf16.msra.mxu0 %v589
  %1329 = vmatprep.subr.bf16.mxu0 0
  %1330 = vmatpush2.bf16.msra.mxu0 0
  %1331 = vmatprep.subr.bf16.mxu0 0
  %1332 = vmatpush2.bf16.msra.mxu0 0
  %1333 = vmatprep.subr.bf16.mxu0 0
  %1334 = vmatpush2.bf16.msra.mxu0 0
  %1335 = vmatprep.subr.bf16.mxu0 0
  %1336 = vmatpush2.bf16.msra.mxu0 0
  %1337 = vmatprep.subr.bf16.mxu0 0
  %1338 = vmatpush2.bf16.msra.mxu0 0
  %1339 = vmatprep.subr.bf16.mxu0 0
  %1340 = vmatpush2.bf16.msra.mxu0 0
  %1341 = vmatprep.subr.bf16.mxu0 0
  %1342 = vmatpush2.bf16.msra.mxu0 0
  %1343 = vmatprep.subr.bf16.mxu0 0
  %1344 = vmatpush2.bf16.msra.mxu0 0
  %1345 = vmatprep.mubr.bf16.mxu0 0
  %1346 = vmatmul.mubr.bf16.gmra.mxu0 %v1312
  %v1347 = vpop.f32.mrf.mxu0
  %v1348 = vadd.f32 0.0, %v1347
  %v1349 = vpop.f32.mrf.mxu0
  %v1350 = vadd.f32 0.0, %v1349
  %v1351 = vpop.f32.mrf.mxu0
  %v1352 = vpop.f32.mrf.mxu0
  %1353 = vdwg.mxu0
  %1354 = vmatprep.subr.bf16.mxu0 %v620
  %1355 = vmatpush1.bf16.msra.mxu0 %v619
  %1356 = vmatprep.subr.bf16.mxu0 %v616
  %1357 = vmatpush1.bf16.msra.mxu0 %v615
  %1358 = vmatprep.subr.bf16.mxu0 %v612
  %1359 = vmatpush1.bf16.msra.mxu0 %v611
  %1360 = vmatprep.subr.bf16.mxu0 %v608
  %1361 = vmatpush1.bf16.msra.mxu0 %v607
  %1362 = vmatprep.subr.bf16.mxu0 %v604
  %1363 = vmatpush1.bf16.msra.mxu0 %v603
  %1364 = vmatprep.subr.bf16.mxu0 %v600
  %1365 = vmatpush1.bf16.msra.mxu0 %v599
  %1366 = vmatprep.subr.bf16.mxu0 %v596
  %1367 = vmatpush1.bf16.msra.mxu0 %v595
  %1368 = vmatprep.subr.bf16.mxu0 %v592
  %1369 = vmatpush1.bf16.msra.mxu0 %v591
  %1370 = vmatprep.subr.bf16.mxu0 0
  %1371 = vmatpush2.bf16.msra.mxu0 0
  %1372 = vmatprep.subr.bf16.mxu0 0
  %1373 = vmatpush2.bf16.msra.mxu0 0
  %1374 = vmatprep.subr.bf16.mxu0 0
  %1375 = vmatpush2.bf16.msra.mxu0 0
  %1376 = vmatprep.subr.bf16.mxu0 0
  %1377 = vmatpush2.bf16.msra.mxu0 0
  %1378 = vmatprep.subr.bf16.mxu0 0
  %1379 = vmatpush2.bf16.msra.mxu0 0
  %1380 = vmatprep.subr.bf16.mxu0 0
  %1381 = vmatpush2.bf16.msra.mxu0 0
  %1382 = vmatprep.subr.bf16.mxu0 0
  %1383 = vmatpush2.bf16.msra.mxu0 0
  %1384 = vmatprep.subr.bf16.mxu0 0
  %1385 = vmatpush2.bf16.msra.mxu0 0
  %1386 = vmatprep.mubr.bf16.mxu0 0
  %1387 = vmatmul.mubr.bf16.gmra.mxu0 %v1312
  %v1388 = vpop.f32.mrf.mxu0
  %v1389 = vadd.f32 0.0, %v1388
  %v1390 = vpop.f32.mrf.mxu0
  %v1391 = vadd.f32 0.0, %v1390
  %v1392 = vpop.f32.mrf.mxu0
  %v1393 = vpop.f32.mrf.mxu0
  %1394 = vdwg.mxu0
  %v1395 = vadd.f32 %v1308, %v1348
  %v1396 = vadd.f32 %v1309, %v1350
  %v1397 = vadd.f32 %v1310, %v1389
  %v1398 = vadd.f32 %v1311, %v1391
  %v1399 = vmul.f32 %v1395, 0.5
  %v1400 = vtanh.pop %v1399
  %v1401 = vmul.f32 %v1400, 0.5
  %v1402 = vadd.f32 %v1401, 0.5
  %v1403 = vmul.f32 %v1396, 0.5
  %v1404 = vtanh.pop %v1403
  %v1405 = vmul.f32 %v1404, 0.5
  %v1406 = vadd.f32 %v1405, 0.5
  %v1407 = vtanh.pop %v1397
  %v1408 = vmul.f32 %v1398, 0.5
  %v1409 = vtanh.pop %v1408
  %v1410 = vmul.f32 %v1409, 0.5
  %v1411 = vadd.f32 %v1410, 0.5
  %v1412 = vmul.f32 %v1406, %v1304
  %v1413 = vmul.f32 %v1402, %v1407
  %v1414 = vadd.f32 %v1412, %v1413
  %v1415 = vtanh.pop %v1414
  %v1416 = vmul.f32 %v1411, %v1415
  %s1417 = scalar_lea.vmem [#allocation2], 224
  %v1418 = vld [vmem:[%s1417] sm:$0xff]
  %v1419 = vld [vmem:[%s1417 + $0x8] sm:$0xff]
  %v1420 = vld [vmem:[%s1417 + $0x10] sm:$0xff]
  %v1421 = vld [vmem:[%s1417 + $0x18] sm:$0xff]
  %v1422 = vpack.c.bf16 %v1416, %v1416
  %1423 = vmatprep.subr.bf16.mxu0 %v618
  %1424 = vmatpush1.bf16.msra.mxu0 %v617
  %1425 = vmatprep.subr.bf16.mxu0 %v614
  %1426 = vmatpush1.bf16.msra.mxu0 %v613
  %1427 = vmatprep.subr.bf16.mxu0 %v610
  %1428 = vmatpush1.bf16.msra.mxu0 %v609
  %1429 = vmatprep.subr.bf16.mxu0 %v606
  %1430 = vmatpush1.bf16.msra.mxu0 %v605
  %1431 = vmatprep.subr.bf16.mxu0 %v602
  %1432 = vmatpush1.bf16.msra.mxu0 %v601
  %1433 = vmatprep.subr.bf16.mxu0 %v598
  %1434 = vmatpush1.bf16.msra.mxu0 %v597
  %1435 = vmatprep.subr.bf16.mxu0 %v594
  %1436 = vmatpush1.bf16.msra.mxu0 %v593
  %1437 = vmatprep.subr.bf16.mxu0 %v590
  %1438 = vmatpush1.bf16.msra.mxu0 %v589
  %1439 = vmatprep.subr.bf16.mxu0 0
  %1440 = vmatpush2.bf16.msra.mxu0 0
  %1441 = vmatprep.subr.bf16.mxu0 0
  %1442 = vmatpush2.bf16.msra.mxu0 0
  %1443 = vmatprep.subr.bf16.mxu0 0
  %1444 = vmatpush2.bf16.msra.mxu0 0
  %1445 = vmatprep.subr.bf16.mxu0 0
  %1446 = vmatpush2.bf16.msra.mxu0 0
  %1447 = vmatprep.subr.bf16.mxu0 0
  %1448 = vmatpush2.bf16.msra.mxu0 0
  %1449 = vmatprep.subr.bf16.mxu0 0
  %1450 = vmatpush2.bf16.msra.mxu0 0
  %1451 = vmatprep.subr.bf16.mxu0 0
  %1452 = vmatpush2.bf16.msra.mxu0 0
  %1453 = vmatprep.subr.bf16.mxu0 0
  %1454 = vmatpush2.bf16.msra.mxu0 0
  %1455 = vmatprep.mubr.bf16.mxu0 0
  %1456 = vmatmul.mubr.bf16.gmra.mxu0 %v1422
  %v1457 = vpop.f32.mrf.mxu0
  %v1458 = vadd.f32 0.0, %v1457
  %v1459 = vpop.f32.mrf.mxu0
  %v1460 = vadd.f32 0.0, %v1459
  %v1461 = vpop.f32.mrf.mxu0
  %v1462 = vpop.f32.mrf.mxu0
  %1463 = vdwg.mxu0
  %1464 = vmatprep.subr.bf16.mxu0 %v620
  %1465 = vmatpush1.bf16.msra.mxu0 %v619
  %1466 = vmatprep.subr.bf16.mxu0 %v616
  %1467 = vmatpush1.bf16.msra.mxu0 %v615
  %1468 = vmatprep.subr.bf16.mxu0 %v612
  %1469 = vmatpush1.bf16.msra.mxu0 %v611
  %1470 = vmatprep.subr.bf16.mxu0 %v608
  %1471 = vmatpush1.bf16.msra.mxu0 %v607
  %1472 = vmatprep.subr.bf16.mxu0 %v604
  %1473 = vmatpush1.bf16.msra.mxu0 %v603
  %1474 = vmatprep.subr.bf16.mxu0 %v600
  %1475 = vmatpush1.bf16.msra.mxu0 %v599
  %1476 = vmatprep.subr.bf16.mxu0 %v596
  %1477 = vmatpush1.bf16.msra.mxu0 %v595
  %1478 = vmatprep.subr.bf16.mxu0 %v592
  %1479 = vmatpush1.bf16.msra.mxu0 %v591
  %1480 = vmatprep.subr.bf16.mxu0 0
  %1481 = vmatpush2.bf16.msra.mxu0 0
  %1482 = vmatprep.subr.bf16.mxu0 0
  %1483 = vmatpush2.bf16.msra.mxu0 0
  %1484 = vmatprep.subr.bf16.mxu0 0
  %1485 = vmatpush2.bf16.msra.mxu0 0
  %1486 = vmatprep.subr.bf16.mxu0 0
  %1487 = vmatpush2.bf16.msra.mxu0 0
  %1488 = vmatprep.subr.bf16.mxu0 0
  %1489 = vmatpush2.bf16.msra.mxu0 0
  %1490 = vmatprep.subr.bf16.mxu0 0
  %1491 = vmatpush2.bf16.msra.mxu0 0
  %1492 = vmatprep.subr.bf16.mxu0 0
  %1493 = vmatpush2.bf16.msra.mxu0 0
  %1494 = vmatprep.subr.bf16.mxu0 0
  %1495 = vmatpush2.bf16.msra.mxu0 0
  %1496 = vmatprep.mubr.bf16.mxu0 0
  %1497 = vmatmul.mubr.bf16.gmra.mxu0 %v1422
  %v1498 = vpop.f32.mrf.mxu0
  %v1499 = vadd.f32 0.0, %v1498
  %v1500 = vpop.f32.mrf.mxu0
  %v1501 = vadd.f32 0.0, %v1500
  %v1502 = vpop.f32.mrf.mxu0
  %v1503 = vpop.f32.mrf.mxu0
  %1504 = vdwg.mxu0
  %v1505 = vadd.f32 %v1418, %v1458
  %v1506 = vadd.f32 %v1419, %v1460
  %v1507 = vadd.f32 %v1420, %v1499
  %v1508 = vadd.f32 %v1421, %v1501
  %v1509 = vmul.f32 %v1505, 0.5
  %v1510 = vtanh.pop %v1509
  %v1511 = vmul.f32 %v1510, 0.5
  %v1512 = vadd.f32 %v1511, 0.5
  %v1513 = vmul.f32 %v1506, 0.5
  %v1514 = vtanh.pop %v1513
  %v1515 = vmul.f32 %v1514, 0.5
  %v1516 = vadd.f32 %v1515, 0.5
  %v1517 = vtanh.pop %v1507
  %v1518 = vmul.f32 %v1508, 0.5
  %v1519 = vtanh.pop %v1518
  %v1520 = vmul.f32 %v1519, 0.5
  %v1521 = vadd.f32 %v1520, 0.5
  %v1522 = vmul.f32 %v1516, %v1414
  %v1523 = vmul.f32 %v1512, %v1517
  %v1524 = vadd.f32 %v1522, %v1523
  %v1525 = vtanh.pop %v1524
  %v1526 = vmul.f32 %v1521, %v1525
  %1527 = vst [vmem:[#allocation3] sm:$0xff] %v1526
  %1528 = vst [vmem:[#allocation4] sm:$0xff] %v1524
  // Predicated region
  $region30: #{sentiment_forward.1} parent=0 // pred_check
    %p1529 = pneg %p24
  $region31: #{sentiment_forward.1} parent=0 // pred_check_branch
    %1531 = sbr.rel (%p1529) target = $region33
  $region32: #{sentiment_forward.1} parent=0 // pred_region
    %v1532 = vpack.c.bf16 %v1526, %v1526
    %v1533 = vld [vmem:[%s4] sm:$0xf]
    %v1534 = vld [vmem:[%s4 + $0x4] sm:$0xf]
    %v1535 = vld [vmem:[%s4 + $0x8] sm:$0xf]
    %v1536 = vld [vmem:[%s4 + $0xc] sm:$0xf]
    %v1537 = vld [vmem:[%s4 + $0x10] sm:$0xf]
    %v1538 = vld [vmem:[%s4 + $0x14] sm:$0xf]
    %v1539 = vld [vmem:[%s4 + $0x18] sm:$0xf]
    %v1540 = vld [vmem:[%s4 + $0x1c] sm:$0xf]
    %v1541 = vld [vmem:[%s4 + $0x20] sm:$0xf]
    %v1542 = vld [vmem:[%s4 + $0x24] sm:$0xf]
    %v1543 = vld [vmem:[%s4 + $0x28] sm:$0xf]
    %v1544 = vld [vmem:[%s4 + $0x2c] sm:$0xf]
    %v1545 = vld [vmem:[%s4 + $0x30] sm:$0xf]
    %v1546 = vld [vmem:[%s4 + $0x34] sm:$0xf]
    %v1547 = vld [vmem:[%s4 + $0x38] sm:$0xf]
    %v1548 = vld [vmem:[%s4 + $0x3c] sm:$0xf]
    %v1549 = vld [vmem:[%s5] sm:$0x1]
    %v1551 = vlaneseq
    %v1552 = vshrl.u32 %v1551, 7
    %v1553 = vsub.s32 0, %v1552
    %v1554 = vrot.slane %v1549, %v1553
    %v1572 = vunpack.c.l.b16 %v1533
    %v1573 = vunpack.c.l.b16 %v1534
    %v1574 = vunpack.c.l.b16 %v1535
    %v1575 = vunpack.c.l.b16 %v1536
    %v1576 = vunpack.c.l.b16 %v1537
    %v1577 = vunpack.c.l.b16 %v1538
    %v1578 = vunpack.c.l.b16 %v1539
    %v1579 = vunpack.c.l.b16 %v1540
    %v1580 = vunpack.c.l.b16 %v1541
    %v1581 = vunpack.c.l.b16 %v1542
    %v1582 = vunpack.c.l.b16 %v1543
    %v1583 = vunpack.c.l.b16 %v1544
    %v1584 = vunpack.c.l.b16 %v1545
    %v1585 = vunpack.c.l.b16 %v1546
    %v1586 = vunpack.c.l.b16 %v1547
    %v1587 = vunpack.c.l.b16 %v1548
    %v1588 = vpack.c.b16 %v1573, %v1572
    %v1589 = vpack.c.b16 %v1575, %v1574
    %v1590 = vpack.c.b16 %v1577, %v1576
    %v1591 = vpack.c.b16 %v1579, %v1578
    %v1592 = vpack.c.b16 %v1581, %v1580
    %v1593 = vpack.c.b16 %v1583, %v1582
    %v1594 = vpack.c.b16 %v1585, %v1584
    %v1595 = vpack.c.b16 %v1587, %v1586
    %1604 = vmatprep.subr.bf16.mxu0 0
    %1605 = vmatpush1.bf16.msra.mxu0 %v1595
    %1606 = vmatprep.subr.bf16.mxu0 0
    %1607 = vmatpush1.bf16.msra.mxu0 %v1594
    %1608 = vmatprep.subr.bf16.mxu0 0
    %1609 = vmatpush1.bf16.msra.mxu0 %v1593
    %1610 = vmatprep.subr.bf16.mxu0 0
    %1611 = vmatpush1.bf16.msra.mxu0 %v1592
    %1612 = vmatprep.subr.bf16.mxu0 0
    %1613 = vmatpush1.bf16.msra.mxu0 %v1591
    %1614 = vmatprep.subr.bf16.mxu0 0
    %1615 = vmatpush1.bf16.msra.mxu0 %v1590
    %1616 = vmatprep.subr.bf16.mxu0 0
    %1617 = vmatpush1.bf16.msra.mxu0 %v1589
    %1618 = vmatprep.subr.bf16.mxu0 0
    %1619 = vmatpush1.bf16.msra.mxu0 %v1588
    %1620 = vmatprep.subr.bf16.mxu0 0
    %1621 = vmatpush2.bf16.msra.mxu0 0
    %1622 = vmatprep.subr.bf16.mxu0 0
    %1623 = vmatpush2.bf16.msra.mxu0 0
    %1624 = vmatprep.subr.bf16.mxu0 0
    %1625 = vmatpush2.bf16.msra.mxu0 0
    %1626 = vmatprep.subr.bf16.mxu0 0
    %1627 = vmatpush2.bf16.msra.mxu0 0
    %1628 = vmatprep.subr.bf16.mxu0 0
    %1629 = vmatpush2.bf16.msra.mxu0 0
    %1630 = vmatprep.subr.bf16.mxu0 0
    %1631 = vmatpush2.bf16.msra.mxu0 0
    %1632 = vmatprep.subr.bf16.mxu0 0
    %1633 = vmatpush2.bf16.msra.mxu0 0
    %1634 = vmatprep.subr.bf16.mxu0 0
    %1635 = vmatpush2.bf16.msra.mxu0 0
    %1636 = vmatprep.mubr.bf16.mxu0 0
    %1637 = vmatmul.mubr.bf16.gmra.mxu0 %v1532
    %v1638 = vpop.f32.mrf.mxu0
    %v1639 = vadd.f32 %v1554, %v1638
    %v1640 = vpop.f32.mrf.mxu0
    %v1641 = vpop.f32.mrf.mxu0
    %v1642 = vpop.f32.mrf.mxu0
    %1643 = vdwg.mxu0
    %1644 = vst [vmem:[%s6] sm:$0xff] %v1639
  $region33: #{sentiment_forward.1} parent=0 // pred_fallthru
    _
  // Predicated region
  $region34: #{sentiment_forward.1} parent=0 // pred_check
    _
  $region35: #{sentiment_forward.1} parent=0 // pred_check_branch
    %1646 = sbr.rel (0) target = $region37
  $region36: #{sentiment_forward.1} parent=0 // pred_region
    _
  $region37: #{sentiment_forward.1} parent=0 // pred_fallthru
    _
  // Predicated region
  $region38: #{sentiment_forward.1} parent=0 // pred_check
    _
  $region39: #{sentiment_forward.1} parent=0 // pred_check_branch
    %1648 = sbr.rel (0) target = $region41
  $region40: #{sentiment_forward.1} parent=0 // pred_region
    _
  $region41: #{sentiment_forward.1} parent=0 // pred_fallthru
    _

</llo_original>
